<compile_context>
chip_gen: v7x
topology: tpu7x:2x2x1
jax: 0.10.0
libtpu: 0.0.40
codegen_flags: <defaults>
</compile_context>

<pallas_src>
import functools

import jax
import jax.numpy as jnp
from jax.experimental import pallas as pl
from jax.experimental.pallas import tpu as pltpu

# True layer sizes of the autoencoder (PyTorch semantics).
DIMS = [384, 200, 50, 10, 50, 200, 384]
# Lane-padded layer widths used inside the kernel (input/output stay 384 = 3*128).
PAD_DIMS = [384, 256, 128, 128, 128, 256, 384]


def _cdiv(a, b):
    return (a + b - 1) // b


def _round_up(x, m):
    return _cdiv(x, m) * m


def _default_act_dtype():
    """bf16 elementwise only where the VPU/EUP support it (v6e / v7x); f32 otherwise."""
    try:
        kind = jax.devices()[0].device_kind.lower()
    except Exception:
        return jnp.float32
    return jnp.bfloat16 if ("v6" in kind or "v7" in kind) else jnp.float32


def _ae_kernel(x_ref,
               w1, b1, w2, b2, w3, b3,     # encoder (padded; bf16 weights, f32 biases)
               w4, b4, w5, b5, w6, b6,     # decoder
               o_ref, *, act_dtype):
    def layer(h, w_ref, b_ref, relu=True):
        # bf16 operands into the MXU (no-op cast when h is already bf16), f32 accumulate;
        # bias add / ReLU run in f32, result is stored in act_dtype (bf16 on v6e/v7x).
        z = jnp.dot(h.astype(jnp.bfloat16), w_ref[...],
                    preferred_element_type=jnp.float32) + b_ref[...]
        if relu:
            z = jnp.maximum(z, 0.0)
        return z.astype(act_dtype)

    h = x_ref[...]                       # already bf16 from the wrapper
    h = layer(h, w1, b1)
    h = layer(h, w2, b2)
    h = layer(h, w3, b3)
    h = layer(h, w4, b4)
    h = layer(h, w5, b5)
    z = layer(h, w6, b6, relu=False)

    # Sigmoid via tanh: a single EUP transcendental + a cheap VPU FMA; saturates cleanly.
    o_ref[...] = (0.5 * jnp.tanh(0.5 * z) + 0.5).astype(o_ref.dtype)


def make_params(key):
    """Deterministic PyTorch-style init (uniform fan-in bounds), f32, unpadded."""
    params = []
    for i in range(6):
        fan_in, fan_out = DIMS[i], DIMS[i + 1]
        key, kw, kb = jax.random.split(key, 3)
        bound = 1.0 / jnp.sqrt(jnp.float32(fan_in))
        w = jax.random.uniform(kw, (fan_in, fan_out), jnp.float32, -bound, bound)
        b = jax.random.uniform(kb, (1, fan_out), jnp.float32, -bound, bound)
        params += [w, b]
    return params


def pad_params(params):
    """Zero-pad hidden dims to lane multiples; weights -> bf16, biases stay f32."""
    padded = []
    for i in range(6):
        w, b = params[2 * i], params[2 * i + 1]
        kin, kout = PAD_DIMS[i], PAD_DIMS[i + 1]
        w_p = jnp.zeros((kin, kout), jnp.float32).at[: w.shape[0], : w.shape[1]].set(w)
        b_p = jnp.zeros((1, kout), jnp.float32).at[:, : b.shape[1]].set(b)
        padded += [w_p.astype(jnp.bfloat16), b_p]
    return padded


@functools.partial(jax.jit, static_argnames=("batch_tile", "act_dtype"))
def linear_autoencoder(x, padded_params, batch_tile=1024, act_dtype=jnp.bfloat16):
    B, D = x.shape
    assert D == DIMS[0]

    # Remainder-aware tiling: equalized tiles (<16 padded rows each, multiple of 16 for
    # bf16 sublane packing) and >=2 grid steps for mid-size batches so both v7x
    # TensorCores get work under dimension_semantics=("parallel",).
    min_steps = 2 if B >= 512 else 1
    num_tiles = max(min_steps, _cdiv(B, batch_tile))
    tile = _round_up(_cdiv(B, num_tiles), 16)
    B_pad = num_tiles * tile

    x = x.astype(jnp.bfloat16)           # halve HBM-in traffic; first dot is bf16 anyway
    if B_pad != B:
        x = jnp.pad(x, ((0, B_pad - B), (0, 0)))

    # Weights/biases: full-extent blocks, constant index map -> resident in VMEM,
    # no re-DMA across batch tiles.
    param_specs = [pl.BlockSpec(p.shape, lambda i: (0, 0)) for p in padded_params]
    in_specs = [pl.BlockSpec((tile, DIMS[0]), lambda i: (i, 0))] + param_specs
    out_spec = pl.BlockSpec((tile, DIMS[-1]), lambda i: (i, 0))

    out = pl.pallas_call(
        functools.partial(_ae_kernel, act_dtype=act_dtype),
        out_shape=jax.ShapeDtypeStruct((B_pad, DIMS[-1]), jnp.float32),
        grid_spec=pl.GridSpec(grid=(num_tiles,), in_specs=in_specs, out_specs=out_spec),
        compiler_params=pltpu.CompilerParams(
            dimension_semantics=("parallel",),          # shard batch tiles across TCs
            vmem_limit_bytes=48 * 1024 * 1024,          # headroom, < v7x 64 MiB physical
        ),
    )(x, *padded_params)
    return out[:B]


def _reference(x, params):
    """Pure-JAX f32 reference with the original (unpadded) weights."""
    h = x
    for i in range(5):
        h = jnp.maximum(h @ params[2 * i] + params[2 * i + 1], 0.0)
    z = h @ params[10] + params[11]
    return jax.nn.sigmoid(z)


if __name__ == "__main__":
    key = jax.random.PRNGKey(0)
    kp, kx = jax.random.split(key)

    params = make_params(kp)          # f32 reference params (PyTorch semantics)
    padded = pad_params(params)       # lane-padded bf16/f32 kernel params

    x = jax.random.uniform(kx, (8, 384), jnp.float32)   # small demo batch

    out = linear_autoencoder(x, padded, act_dtype=_default_act_dtype())
    out = jax.block_until_ready(out)

    ref = _reference(x, params)
    assert out.shape == (8, 384)
    # bf16 matmul operands (+ bf16 activations / tanh on v6e/v7x) vs f32 reference.
    assert jnp.allclose(out, ref, atol=3e-2, rtol=3e-2), "mismatch vs f32 reference"

    print("KERNEL_OK")
</pallas_src>

<mosaic_0001>
module attributes {stable_mosaic.version = 11 : i64} {
  func.func @_ae_kernel(%arg0: i32, %arg1: memref<16x384xbf16, #tpu.memory_space<vmem>>, %arg2: memref<384x256xbf16, #tpu.memory_space<vmem>>, %arg3: memref<1x256xf32, #tpu.memory_space<vmem>>, %arg4: memref<256x128xbf16, #tpu.memory_space<vmem>>, %arg5: memref<1x128xf32, #tpu.memory_space<vmem>>, %arg6: memref<128x128xbf16, #tpu.memory_space<vmem>>, %arg7: memref<1x128xf32, #tpu.memory_space<vmem>>, %arg8: memref<128x128xbf16, #tpu.memory_space<vmem>>, %arg9: memref<1x128xf32, #tpu.memory_space<vmem>>, %arg10: memref<128x256xbf16, #tpu.memory_space<vmem>>, %arg11: memref<1x256xf32, #tpu.memory_space<vmem>>, %arg12: memref<256x384xbf16, #tpu.memory_space<vmem>>, %arg13: memref<1x384xf32, #tpu.memory_space<vmem>>, %arg14: memref<16x384xf32, #tpu.memory_space<vmem>>) attributes {dimension_semantics = [#tpu.dimension_semantics<parallel>], iteration_bounds = array<i64: 1>, scalar_prefetch = 0 : i64, scratch_operands = 0 : i64, tpu.core_type = #tpu.core_type<tc>, window_params = [{transform_indices = @transform_0, window_bounds = array<i64: 16, 384>}, {pipeline_mode = #tpu.pipeline_mode<synchronous>, transform_indices = @transform_1, window_bounds = array<i64: 384, 256>}, {pipeline_mode = #tpu.pipeline_mode<synchronous>, transform_indices = @transform_2, window_bounds = array<i64: 1, 256>}, {pipeline_mode = #tpu.pipeline_mode<synchronous>, transform_indices = @transform_3, window_bounds = array<i64: 256, 128>}, {pipeline_mode = #tpu.pipeline_mode<synchronous>, transform_indices = @transform_4, window_bounds = array<i64: 1, 128>}, {pipeline_mode = #tpu.pipeline_mode<synchronous>, transform_indices = @transform_5, window_bounds = array<i64: 128, 128>}, {pipeline_mode = #tpu.pipeline_mode<synchronous>, transform_indices = @transform_6, window_bounds = array<i64: 1, 128>}, {pipeline_mode = #tpu.pipeline_mode<synchronous>, transform_indices = @transform_7, window_bounds = array<i64: 128, 128>}, {pipeline_mode = #tpu.pipeline_mode<synchronous>, transform_indices = @transform_8, window_bounds = array<i64: 1, 128>}, {pipeline_mode = #tpu.pipeline_mode<synchronous>, transform_indices = @transform_9, window_bounds = array<i64: 128, 256>}, {pipeline_mode = #tpu.pipeline_mode<synchronous>, transform_indices = @transform_10, window_bounds = array<i64: 1, 256>}, {pipeline_mode = #tpu.pipeline_mode<synchronous>, transform_indices = @transform_11, window_bounds = array<i64: 256, 384>}, {pipeline_mode = #tpu.pipeline_mode<synchronous>, transform_indices = @transform_12, window_bounds = array<i64: 1, 384>}, {transform_indices = @transform_13, window_bounds = array<i64: 16, 384>}]} {
    %c0 = arith.constant 0 : index
    %c0_0 = arith.constant 0 : index
    %0 = vector.load %arg1[%c0, %c0_0] : memref<16x384xbf16, #tpu.memory_space<vmem>>, vector<16x384xbf16>
    %c0_1 = arith.constant 0 : index
    %c0_2 = arith.constant 0 : index
    %1 = vector.load %arg2[%c0_1, %c0_2] : memref<384x256xbf16, #tpu.memory_space<vmem>>, vector<384x256xbf16>
    %cst = arith.constant dense<0.000000e+00> : vector<16x256xf32>
    %2 = tpu.matmul %0, %1, %cst {dimension_numbers = #tpu.dot_dimension_numbers<[1], [0], [0], [1], [0, 0, 1, 1], [], []>} : vector<16x384xbf16>, vector<384x256xbf16>, vector<16x256xf32> -> vector<16x256xf32>
    %c0_3 = arith.constant 0 : index
    %c0_4 = arith.constant 0 : index
    %3 = vector.load %arg3[%c0_3, %c0_4] : memref<1x256xf32, #tpu.memory_space<vmem>>, vector<1x256xf32>
    %4 = vector.broadcast %3 : vector<1x256xf32> to vector<16x256xf32>
    %5 = arith.addf %2, %4 : vector<16x256xf32>
    %cst_5 = arith.constant 0.000000e+00 : f32
    %6 = vector.broadcast %cst_5 : f32 to vector<16x256xf32>
    %7 = arith.maximumf %5, %6 : vector<16x256xf32>
    %8 = arith.truncf %7 : vector<16x256xf32> to vector<16x256xbf16>
    %c0_6 = arith.constant 0 : index
    %c0_7 = arith.constant 0 : index
    %9 = vector.load %arg4[%c0_6, %c0_7] : memref<256x128xbf16, #tpu.memory_space<vmem>>, vector<256x128xbf16>
    %cst_8 = arith.constant dense<0.000000e+00> : vector<16x128xf32>
    %10 = tpu.matmul %8, %9, %cst_8 {dimension_numbers = #tpu.dot_dimension_numbers<[1], [0], [0], [1], [0, 0, 1, 1], [], []>} : vector<16x256xbf16>, vector<256x128xbf16>, vector<16x128xf32> -> vector<16x128xf32>
    %c0_9 = arith.constant 0 : index
    %c0_10 = arith.constant 0 : index
    %11 = vector.load %arg5[%c0_9, %c0_10] : memref<1x128xf32, #tpu.memory_space<vmem>>, vector<1x128xf32>
    %12 = vector.broadcast %11 : vector<1x128xf32> to vector<16x128xf32>
    %13 = arith.addf %10, %12 : vector<16x128xf32>
    %cst_11 = arith.constant 0.000000e+00 : f32
    %14 = vector.broadcast %cst_11 : f32 to vector<16x128xf32>
    %15 = arith.maximumf %13, %14 : vector<16x128xf32>
    %16 = arith.truncf %15 : vector<16x128xf32> to vector<16x128xbf16>
    %c0_12 = arith.constant 0 : index
    %c0_13 = arith.constant 0 : index
    %17 = vector.load %arg6[%c0_12, %c0_13] : memref<128x128xbf16, #tpu.memory_space<vmem>>, vector<128x128xbf16>
    %cst_14 = arith.constant dense<0.000000e+00> : vector<16x128xf32>
    %18 = tpu.matmul %16, %17, %cst_14 {dimension_numbers = #tpu.dot_dimension_numbers<[1], [0], [0], [1], [0, 0, 1, 1], [], []>} : vector<16x128xbf16>, vector<128x128xbf16>, vector<16x128xf32> -> vector<16x128xf32>
    %c0_15 = arith.constant 0 : index
    %c0_16 = arith.constant 0 : index
    %19 = vector.load %arg7[%c0_15, %c0_16] : memref<1x128xf32, #tpu.memory_space<vmem>>, vector<1x128xf32>
    %20 = vector.broadcast %19 : vector<1x128xf32> to vector<16x128xf32>
    %21 = arith.addf %18, %20 : vector<16x128xf32>
    %cst_17 = arith.constant 0.000000e+00 : f32
    %22 = vector.broadcast %cst_17 : f32 to vector<16x128xf32>
    %23 = arith.maximumf %21, %22 : vector<16x128xf32>
    %24 = arith.truncf %23 : vector<16x128xf32> to vector<16x128xbf16>
    %c0_18 = arith.constant 0 : index
    %c0_19 = arith.constant 0 : index
    %25 = vector.load %arg8[%c0_18, %c0_19] : memref<128x128xbf16, #tpu.memory_space<vmem>>, vector<128x128xbf16>
    %cst_20 = arith.constant dense<0.000000e+00> : vector<16x128xf32>
    %26 = tpu.matmul %24, %25, %cst_20 {dimension_numbers = #tpu.dot_dimension_numbers<[1], [0], [0], [1], [0, 0, 1, 1], [], []>} : vector<16x128xbf16>, vector<128x128xbf16>, vector<16x128xf32> -> vector<16x128xf32>
    %c0_21 = arith.constant 0 : index
    %c0_22 = arith.constant 0 : index
    %27 = vector.load %arg9[%c0_21, %c0_22] : memref<1x128xf32, #tpu.memory_space<vmem>>, vector<1x128xf32>
    %28 = vector.broadcast %27 : vector<1x128xf32> to vector<16x128xf32>
    %29 = arith.addf %26, %28 : vector<16x128xf32>
    %cst_23 = arith.constant 0.000000e+00 : f32
    %30 = vector.broadcast %cst_23 : f32 to vector<16x128xf32>
    %31 = arith.maximumf %29, %30 : vector<16x128xf32>
    %32 = arith.truncf %31 : vector<16x128xf32> to vector<16x128xbf16>
    %c0_24 = arith.constant 0 : index
    %c0_25 = arith.constant 0 : index
    %33 = vector.load %arg10[%c0_24, %c0_25] : memref<128x256xbf16, #tpu.memory_space<vmem>>, vector<128x256xbf16>
    %cst_26 = arith.constant dense<0.000000e+00> : vector<16x256xf32>
    %34 = tpu.matmul %32, %33, %cst_26 {dimension_numbers = #tpu.dot_dimension_numbers<[1], [0], [0], [1], [0, 0, 1, 1], [], []>} : vector<16x128xbf16>, vector<128x256xbf16>, vector<16x256xf32> -> vector<16x256xf32>
    %c0_27 = arith.constant 0 : index
    %c0_28 = arith.constant 0 : index
    %35 = vector.load %arg11[%c0_27, %c0_28] : memref<1x256xf32, #tpu.memory_space<vmem>>, vector<1x256xf32>
    %36 = vector.broadcast %35 : vector<1x256xf32> to vector<16x256xf32>
    %37 = arith.addf %34, %36 : vector<16x256xf32>
    %cst_29 = arith.constant 0.000000e+00 : f32
    %38 = vector.broadcast %cst_29 : f32 to vector<16x256xf32>
    %39 = arith.maximumf %37, %38 : vector<16x256xf32>
    %40 = arith.truncf %39 : vector<16x256xf32> to vector<16x256xbf16>
    %c0_30 = arith.constant 0 : index
    %c0_31 = arith.constant 0 : index
    %41 = vector.load %arg12[%c0_30, %c0_31] : memref<256x384xbf16, #tpu.memory_space<vmem>>, vector<256x384xbf16>
    %cst_32 = arith.constant dense<0.000000e+00> : vector<16x384xf32>
    %42 = tpu.matmul %40, %41, %cst_32 {dimension_numbers = #tpu.dot_dimension_numbers<[1], [0], [0], [1], [0, 0, 1, 1], [], []>} : vector<16x256xbf16>, vector<256x384xbf16>, vector<16x384xf32> -> vector<16x384xf32>
    %c0_33 = arith.constant 0 : index
    %c0_34 = arith.constant 0 : index
    %43 = vector.load %arg13[%c0_33, %c0_34] : memref<1x384xf32, #tpu.memory_space<vmem>>, vector<1x384xf32>
    %44 = vector.broadcast %43 : vector<1x384xf32> to vector<16x384xf32>
    %45 = arith.addf %42, %44 : vector<16x384xf32>
    %cst_35 = arith.constant 5.000000e-01 : f32
    %46 = vector.broadcast %cst_35 : f32 to vector<16x384xf32>
    %47 = arith.mulf %46, %45 : vector<16x384xf32>
    %48 = math.tanh %47 : vector<16x384xf32>
    %cst_36 = arith.constant 5.000000e-01 : f32
    %49 = vector.broadcast %cst_36 : f32 to vector<16x384xf32>
    %50 = arith.mulf %49, %48 : vector<16x384xf32>
    %cst_37 = arith.constant 5.000000e-01 : f32
    %51 = vector.broadcast %cst_37 : f32 to vector<16x384xf32>
    %52 = arith.addf %50, %51 : vector<16x384xf32>
    %c0_38 = arith.constant 0 : index
    %c0_39 = arith.constant 0 : index
    %53 = vector.load %arg14[%c0_38, %c0_39] : memref<16x384xf32, #tpu.memory_space<vmem>>, vector<16x384xf32>
    tpu.vector_store %arg14[%c0_38, %c0_39], %52 {strides = array<i32>} : memref<16x384xf32, #tpu.memory_space<vmem>>, vector<16x384xf32>,
    return
  }
  func.func @transform_0(%arg0: i32) -> (i32, i32) {
    %c0_i32 = arith.constant 0 : i32
    %c0_i32_0 = arith.constant 0 : i32
    return %arg0, %c0_i32 : i32, i32
  }
  func.func @transform_1(%arg0: i32) -> (i32, i32) {
    %c0_i32 = arith.constant 0 : i32
    %c0_i32_0 = arith.constant 0 : i32
    %c0_i32_1 = arith.constant 0 : i32
    return %c0_i32, %c0_i32_0 : i32, i32
  }
  func.func @transform_2(%arg0: i32) -> (i32, i32) {
    %c0_i32 = arith.constant 0 : i32
    %c0_i32_0 = arith.constant 0 : i32
    %c0_i32_1 = arith.constant 0 : i32
    return %c0_i32, %c0_i32_0 : i32, i32
  }
  func.func @transform_3(%arg0: i32) -> (i32, i32) {
    %c0_i32 = arith.constant 0 : i32
    %c0_i32_0 = arith.constant 0 : i32
    %c0_i32_1 = arith.constant 0 : i32
    return %c0_i32, %c0_i32_0 : i32, i32
  }
  func.func @transform_4(%arg0: i32) -> (i32, i32) {
    %c0_i32 = arith.constant 0 : i32
    %c0_i32_0 = arith.constant 0 : i32
    %c0_i32_1 = arith.constant 0 : i32
    return %c0_i32, %c0_i32_0 : i32, i32
  }
  func.func @transform_5(%arg0: i32) -> (i32, i32) {
    %c0_i32 = arith.constant 0 : i32
    %c0_i32_0 = arith.constant 0 : i32
    %c0_i32_1 = arith.constant 0 : i32
    return %c0_i32, %c0_i32_0 : i32, i32
  }
  func.func @transform_6(%arg0: i32) -> (i32, i32) {
    %c0_i32 = arith.constant 0 : i32
    %c0_i32_0 = arith.constant 0 : i32
    %c0_i32_1 = arith.constant 0 : i32
    return %c0_i32, %c0_i32_0 : i32, i32
  }
  func.func @transform_7(%arg0: i32) -> (i32, i32) {
    %c0_i32 = arith.constant 0 : i32
    %c0_i32_0 = arith.constant 0 : i32
    %c0_i32_1 = arith.constant 0 : i32
    return %c0_i32, %c0_i32_0 : i32, i32
  }
  func.func @transform_8(%arg0: i32) -> (i32, i32) {
    %c0_i32 = arith.constant 0 : i32
    %c0_i32_0 = arith.constant 0 : i32
    %c0_i32_1 = arith.constant 0 : i32
    return %c0_i32, %c0_i32_0 : i32, i32
  }
  func.func @transform_9(%arg0: i32) -> (i32, i32) {
    %c0_i32 = arith.constant 0 : i32
    %c0_i32_0 = arith.constant 0 : i32
    %c0_i32_1 = arith.constant 0 : i32
    return %c0_i32, %c0_i32_0 : i32, i32
  }
  func.func @transform_10(%arg0: i32) -> (i32, i32) {
    %c0_i32 = arith.constant 0 : i32
    %c0_i32_0 = arith.constant 0 : i32
    %c0_i32_1 = arith.constant 0 : i32
    return %c0_i32, %c0_i32_0 : i32, i32
  }
  func.func @transform_11(%arg0: i32) -> (i32, i32) {
    %c0_i32 = arith.constant 0 : i32
    %c0_i32_0 = arith.constant 0 : i32
    %c0_i32_1 = arith.constant 0 : i32
    return %c0_i32, %c0_i32_0 : i32, i32
  }
  func.func @transform_12(%arg0: i32) -> (i32, i32) {
    %c0_i32 = arith.constant 0 : i32
    %c0_i32_0 = arith.constant 0 : i32
    %c0_i32_1 = arith.constant 0 : i32
    return %c0_i32, %c0_i32_0 : i32, i32
  }
  func.func @transform_13(%arg0: i32) -> (i32, i32) {
    %c0_i32 = arith.constant 0 : i32
    %c0_i32_0 = arith.constant 0 : i32
    return %arg0, %c0_i32 : i32, i32
  }
}

</mosaic_0001>

<llo_original>
// kernel: linear_autoencoder.1
$region0: #{linear_autoencoder.1}
  #allocation0 [shape = 'u32[]', space=smem, size = 0x4, offset = 0x4, fixed_abs, tag = 'smem constant byte address 0x4 - core index']
  #allocation1 [shape = 'u32[144,128]{1,0:T(1,128)}', space=vmem, size = 0x12000, scoped, tag = 'internal scratch']
  %s0 = inlined_call_operand.vmem [shape: bf16[16,384], index: 0, kind: input, shape index: {}]
  %s1 = inlined_call_operand.hbm [shape: bf16[384,256], index: 1, kind: input, shape index: {}]
  %s2 = inlined_call_operand.vmem [shape: f32[1,256], index: 2, kind: input, shape index: {}]
  %s3 = inlined_call_operand.hbm [shape: bf16[256,128], index: 3, kind: input, shape index: {}]
  %s4 = inlined_call_operand.vmem [shape: f32[1,128], index: 4, kind: input, shape index: {}]
  %s5 = inlined_call_operand.vmem [shape: bf16[128,128], index: 5, kind: input, shape index: {}]
  %s6 = inlined_call_operand.vmem [shape: f32[1,128], index: 6, kind: input, shape index: {}]
  %s7 = inlined_call_operand.hbm [shape: bf16[128,128], index: 7, kind: input, shape index: {}]
  %s8 = inlined_call_operand.vmem [shape: f32[1,128], index: 8, kind: input, shape index: {}]
  %s9 = inlined_call_operand.hbm [shape: bf16[128,256], index: 9, kind: input, shape index: {}]
  %s10 = inlined_call_operand.vmem [shape: f32[1,256], index: 10, kind: input, shape index: {}]
  %s11 = inlined_call_operand.hbm [shape: bf16[256,384], index: 11, kind: input, shape index: {}]
  %s12 = inlined_call_operand.vmem [shape: f32[1,384], index: 12, kind: input, shape index: {}]
  %s13 = inlined_call_operand.vmem [shape: f32[16,384], index: 13, kind: output, shape index: {}]
  %s14 = sld [smem:[#allocation0]]
  $region82: #{linear_autoencoder.1} parent=0
    _
  %s16 = ssub.s32 1, %s14
  %s17 = scalar_select 0, %s16, %s14
  $region1: #{linear_autoencoder.1} parent=0
    #allocation2 [shape = 'u8[196608]{0}', space=vmem, size = 0x30000, scoped, tag = 'input window, operand 1, single buffered']
    #allocation3 [shape = 's32[1]{0}', space=sflag, size = 0x4, scoped, tag = 'scoped memory for linear_autoencoder.1']
    #allocation4 [shape = 'u8[65536]{0}', space=vmem, size = 0x10000, scoped, tag = 'input window, operand 3, single buffered']
    #allocation5 [shape = 's32[1]{0}', space=sflag, size = 0x4, scoped, tag = 'scoped memory for linear_autoencoder.1']
    #allocation6 [shape = 'u8[32768]{0}', space=vmem, size = 0x8000, scoped, tag = 'input window, operand 7, single buffered']
    #allocation7 [shape = 'u8[65536]{0}', space=vmem, size = 0x10000, scoped, tag = 'input window, operand 9, single buffered']
    #allocation8 [shape = 's32[1]{0}', space=sflag, size = 0x4, scoped, tag = 'scoped memory for linear_autoencoder.1']
    #allocation9 [shape = 'u8[196608]{0}', space=vmem, size = 0x30000, scoped, tag = 'input window, operand 11, single buffered']
    %18 = vsyncpa [#allocation3], 0
    %19 = vsyncpa [#allocation5], 0
    %20 = vsyncpa [#allocation8], 0
    // Predicated region
    $region2: #{linear_autoencoder.1} parent=1 // pred_check
      _
    $region3: #{linear_autoencoder.1} parent=1 // pred_check_branch
      %22 = sbr.rel (0) target = $region5
    $region4: #{linear_autoencoder.1} parent=1 // pred_region
      _
    $region5: #{linear_autoencoder.1} parent=1 // pred_fallthru
      _
    // Predicated region
    $region6: #{linear_autoencoder.1} parent=1 // pred_check
      _
    $region7: #{linear_autoencoder.1} parent=1 // pred_check_branch
      %24 = sbr.rel (0) target = $region9
    $region8: #{linear_autoencoder.1} parent=1 // pred_region
      %s26 = ssub.s32 6144, 6144
      %27 = vsyncadd [#allocation3], %s26
      %s28 = sshll.u32 [#allocation2], 4
      %s29 = int_to_ptr.vmem [resolvable:$true] %s28
      %34 = dma.hbm_to_vmem [thread:$0]  %s1, 6144, %s29, [#allocation3], 128, 128, 8
    $region9: #{linear_autoencoder.1} parent=1 // pred_fallthru
      _
    // Predicated region
    $region10: #{linear_autoencoder.1} parent=1 // pred_check
      _
    $region11: #{linear_autoencoder.1} parent=1 // pred_check_branch
      %36 = sbr.rel (0) target = $region13
    $region12: #{linear_autoencoder.1} parent=1 // pred_region
      _
    $region13: #{linear_autoencoder.1} parent=1 // pred_fallthru
      _
    // Predicated region
    $region14: #{linear_autoencoder.1} parent=1 // pred_check
      _
    $region15: #{linear_autoencoder.1} parent=1 // pred_check_branch
      %38 = sbr.rel (0) target = $region17
    $region16: #{linear_autoencoder.1} parent=1 // pred_region
      %s40 = ssub.s32 2048, 2048
      %41 = vsyncadd [#allocation5], %s40
      %s42 = sshll.u32 [#allocation4], 4
      %s43 = int_to_ptr.vmem [resolvable:$true] %s42
      %48 = dma.hbm_to_vmem [thread:$0]  %s3, 2048, %s43, [#allocation5], 64, 64, 4
    $region17: #{linear_autoencoder.1} parent=1 // pred_fallthru
      _
    // Predicated region
    $region18: #{linear_autoencoder.1} parent=1 // pred_check
      _
    $region19: #{linear_autoencoder.1} parent=1 // pred_check_branch
      %50 = sbr.rel (0) target = $region21
    $region20: #{linear_autoencoder.1} parent=1 // pred_region
      _
    $region21: #{linear_autoencoder.1} parent=1 // pred_fallthru
      _
    // Predicated region
    $region22: #{linear_autoencoder.1} parent=1 // pred_check
      _
    $region23: #{linear_autoencoder.1} parent=1 // pred_check_branch
      %52 = sbr.rel (0) target = $region25
    $region24: #{linear_autoencoder.1} parent=1 // pred_region
      _
    $region25: #{linear_autoencoder.1} parent=1 // pred_fallthru
      _
    // Predicated region
    $region26: #{linear_autoencoder.1} parent=1 // pred_check
      _
    $region27: #{linear_autoencoder.1} parent=1 // pred_check_branch
      %54 = sbr.rel (0) target = $region29
    $region28: #{linear_autoencoder.1} parent=1 // pred_region
      _
    $region29: #{linear_autoencoder.1} parent=1 // pred_fallthru
      _
    // Predicated region
    $region30: #{linear_autoencoder.1} parent=1 // pred_check
      _
    $region31: #{linear_autoencoder.1} parent=1 // pred_check_branch
      %56 = sbr.rel (0) target = $region33
    $region32: #{linear_autoencoder.1} parent=1 // pred_region
      %s58 = ssub.s32 1024, 1024
      %59 = vsyncadd [#allocation5], %s58
      %s60 = sshll.u32 [#allocation6], 4
      %s61 = int_to_ptr.vmem [resolvable:$true] %s60
      %66 = dma.hbm_to_vmem [thread:$0]  %s7, 1024, %s61, [#allocation5], 64, 64, 4
    $region33: #{linear_autoencoder.1} parent=1 // pred_fallthru
      _
    // Predicated region
    $region34: #{linear_autoencoder.1} parent=1 // pred_check
      _
    $region35: #{linear_autoencoder.1} parent=1 // pred_check_branch
      %68 = sbr.rel (0) target = $region37
    $region36: #{linear_autoencoder.1} parent=1 // pred_region
      _
    $region37: #{linear_autoencoder.1} parent=1 // pred_fallthru
      _
    // Predicated region
    $region38: #{linear_autoencoder.1} parent=1 // pred_check
      _
    $region39: #{linear_autoencoder.1} parent=1 // pred_check_branch
      %70 = sbr.rel (0) target = $region41
    $region40: #{linear_autoencoder.1} parent=1 // pred_region
      %s72 = ssub.s32 2048, 2048
      %73 = vsyncadd [#allocation8], %s72
      %s74 = sshll.u32 [#allocation7], 4
      %s75 = int_to_ptr.vmem [resolvable:$true] %s74
      %80 = dma.hbm_to_vmem [thread:$0]  %s9, 2048, %s75, [#allocation8], 128, 128, 8
    $region41: #{linear_autoencoder.1} parent=1 // pred_fallthru
      _
    // Predicated region
    $region42: #{linear_autoencoder.1} parent=1 // pred_check
      _
    $region43: #{linear_autoencoder.1} parent=1 // pred_check_branch
      %82 = sbr.rel (0) target = $region45
    $region44: #{linear_autoencoder.1} parent=1 // pred_region
      _
    $region45: #{linear_autoencoder.1} parent=1 // pred_fallthru
      _
    // Predicated region
    $region46: #{linear_autoencoder.1} parent=1 // pred_check
      _
    $region47: #{linear_autoencoder.1} parent=1 // pred_check_branch
      %84 = sbr.rel (0) target = $region49
    $region48: #{linear_autoencoder.1} parent=1 // pred_region
      %s86 = ssub.s32 6144, 6144
      %87 = vsyncadd [#allocation8], %s86
      %s88 = sshll.u32 [#allocation9], 4
      %s89 = int_to_ptr.vmem [resolvable:$true] %s88
      %94 = dma.hbm_to_vmem [thread:$0]  %s11, 6144, %s89, [#allocation8], 192, 192, 12
    $region49: #{linear_autoencoder.1} parent=1 // pred_fallthru
      _
    // Predicated region
    $region50: #{linear_autoencoder.1} parent=1 // pred_check
      _
    $region51: #{linear_autoencoder.1} parent=1 // pred_check_branch
      %96 = sbr.rel (0) target = $region53
    $region52: #{linear_autoencoder.1} parent=1 // pred_region
      _
    $region53: #{linear_autoencoder.1} parent=1 // pred_fallthru
      _
    // Predicated region
    $region54: #{linear_autoencoder.1} parent=1 // pred_check
      _
    $region55: #{linear_autoencoder.1} parent=1 // pred_check_branch
      %98 = sbr.rel (0) target = $region57
    $region56: #{linear_autoencoder.1} parent=1 // pred_region
      %99 = dma.done [#allocation3], 6144
    $region57: #{linear_autoencoder.1} parent=1 // pred_fallthru
      _
    // Predicated region
    $region58: #{linear_autoencoder.1} parent=1 // pred_check
      _
    $region59: #{linear_autoencoder.1} parent=1 // pred_check_branch
      %101 = sbr.rel (0) target = $region61
    $region60: #{linear_autoencoder.1} parent=1 // pred_region
      %102 = dma.done [#allocation5], 2048
    $region61: #{linear_autoencoder.1} parent=1 // pred_fallthru
      _
    // Predicated region
    $region62: #{linear_autoencoder.1} parent=1 // pred_check
      _
    $region63: #{linear_autoencoder.1} parent=1 // pred_check_branch
      %104 = sbr.rel (0) target = $region65
    $region64: #{linear_autoencoder.1} parent=1 // pred_region
      %105 = dma.done [#allocation5], 1024
    $region65: #{linear_autoencoder.1} parent=1 // pred_fallthru
      _
    // Predicated region
    $region66: #{linear_autoencoder.1} parent=1 // pred_check
      _
    $region67: #{linear_autoencoder.1} parent=1 // pred_check_branch
      %107 = sbr.rel (0) target = $region69
    $region68: #{linear_autoencoder.1} parent=1 // pred_region
      %108 = dma.done [#allocation8], 2048
    $region69: #{linear_autoencoder.1} parent=1 // pred_fallthru
      _
    // Predicated region
    $region70: #{linear_autoencoder.1} parent=1 // pred_check
      _
    $region71: #{linear_autoencoder.1} parent=1 // pred_check_branch
      %110 = sbr.rel (0) target = $region73
    $region72: #{linear_autoencoder.1} parent=1 // pred_region
      %111 = dma.done [#allocation8], 6144
    $region73: #{linear_autoencoder.1} parent=1 // pred_fallthru
      _
    %v113 = vld [vmem:[%s0] sm:$0xff]
    %v114 = vld [vmem:[%s0 + $0x8] sm:$0xf]
    %v115 = vld [vmem:[%s0 + $0xc] sm:$0xff]
    %v116 = vld [vmem:[%s0 + $0x14] sm:$0xf]
    %v117 = vld [vmem:[#allocation2] sm:$0xff]
    %v118 = vld [vmem:[#allocation2 + $0x8] sm:$0xff]
    %v119 = vld [vmem:[#allocation2 + $0x10] sm:$0xff]
    %v120 = vld [vmem:[#allocation2 + $0x18] sm:$0xff]
    %v121 = vld [vmem:[#allocation2 + $0x20] sm:$0xff]
    %v122 = vld [vmem:[#allocation2 + $0x28] sm:$0xff]
    %v123 = vld [vmem:[#allocation2 + $0x30] sm:$0xff]
    %v124 = vld [vmem:[#allocation2 + $0x38] sm:$0xff]
    %v125 = vld [vmem:[#allocation2 + $0x40] sm:$0xff]
    %v126 = vld [vmem:[#allocation2 + $0x48] sm:$0xff]
    %v127 = vld [vmem:[#allocation2 + $0x50] sm:$0xff]
    %v128 = vld [vmem:[#allocation2 + $0x58] sm:$0xff]
    %v129 = vld [vmem:[#allocation2 + $0x60] sm:$0xff]
    %v130 = vld [vmem:[#allocation2 + $0x68] sm:$0xff]
    %v131 = vld [vmem:[#allocation2 + $0x70] sm:$0xff]
    %v132 = vld [vmem:[#allocation2 + $0x78] sm:$0xff]
    %v133 = vld [vmem:[#allocation2 + $0x80] sm:$0xff]
    %v134 = vld [vmem:[#allocation2 + $0x88] sm:$0xff]
    %v135 = vld [vmem:[#allocation2 + $0x90] sm:$0xff]
    %v136 = vld [vmem:[#allocation2 + $0x98] sm:$0xff]
    %v137 = vld [vmem:[#allocation2 + $0xa0] sm:$0xff]
    %v138 = vld [vmem:[#allocation2 + $0xa8] sm:$0xff]
    %v139 = vld [vmem:[#allocation2 + $0xb0] sm:$0xff]
    %v140 = vld [vmem:[#allocation2 + $0xb8] sm:$0xff]
    %v141 = vld [vmem:[#allocation2 + $0xc0] sm:$0xff]
    %v142 = vld [vmem:[#allocation2 + $0xc8] sm:$0xff]
    %v143 = vld [vmem:[#allocation2 + $0xd0] sm:$0xff]
    %v144 = vld [vmem:[#allocation2 + $0xd8] sm:$0xff]
    %v145 = vld [vmem:[#allocation2 + $0xe0] sm:$0xff]
    %v146 = vld [vmem:[#allocation2 + $0xe8] sm:$0xff]
    %v147 = vld [vmem:[#allocation2 + $0xf0] sm:$0xff]
    %v148 = vld [vmem:[#allocation2 + $0xf8] sm:$0xff]
    %v149 = vld [vmem:[#allocation2 + $0x100] sm:$0xff]
    %v150 = vld [vmem:[#allocation2 + $0x108] sm:$0xff]
    %v151 = vld [vmem:[#allocation2 + $0x110] sm:$0xff]
    %v152 = vld [vmem:[#allocation2 + $0x118] sm:$0xff]
    %v153 = vld [vmem:[#allocation2 + $0x120] sm:$0xff]
    %v154 = vld [vmem:[#allocation2 + $0x128] sm:$0xff]
    %v155 = vld [vmem:[#allocation2 + $0x130] sm:$0xff]
    %v156 = vld [vmem:[#allocation2 + $0x138] sm:$0xff]
    %v157 = vld [vmem:[#allocation2 + $0x140] sm:$0xff]
    %v158 = vld [vmem:[#allocation2 + $0x148] sm:$0xff]
    %v159 = vld [vmem:[#allocation2 + $0x150] sm:$0xff]
    %v160 = vld [vmem:[#allocation2 + $0x158] sm:$0xff]
    %v161 = vld [vmem:[#allocation2 + $0x160] sm:$0xff]
    %v162 = vld [vmem:[#allocation2 + $0x168] sm:$0xff]
    %v163 = vld [vmem:[#allocation2 + $0x170] sm:$0xff]
    %v164 = vld [vmem:[#allocation2 + $0x178] sm:$0xff]
    %v165 = vld [vmem:[%s2] sm:$0x3]
    %v167 = vlaneseq
    %v168 = vshrl.u32 %v167, 7
    %v169 = vsub.s32 0, %v168
    %v170 = vrot.slane %v165, %v169
    %v171 = vlaneseq
    %v172 = vshrl.u32 %v171, 7
    %v173 = vsub.s32 1, %v172
    %v174 = vrot.slane %v165, %v173
    %v181 = vunpack.c.l.b16 %v113
    %v182 = vunpack.c.h.b16 %v113
    %v183 = vunpack.c.l.b16 %v114
    %v184 = vunpack.c.l.b16 %v115
    %v185 = vunpack.c.h.b16 %v115
    %v186 = vunpack.c.l.b16 %v116
    %v187 = vpack.c.b16 %v184, %v181
    %v188 = vpack.c.b16 %v185, %v182
    %v189 = vpack.c.b16 %v186, %v183
    %v241 = vunpack.c.l.b16 %v117
    %v242 = vunpack.c.h.b16 %v117
    %v243 = vunpack.c.l.b16 %v118
    %v244 = vunpack.c.h.b16 %v118
    %v245 = vunpack.c.l.b16 %v119
    %v246 = vunpack.c.h.b16 %v119
    %v247 = vunpack.c.l.b16 %v120
    %v248 = vunpack.c.h.b16 %v120
    %v249 = vunpack.c.l.b16 %v121
    %v250 = vunpack.c.h.b16 %v121
    %v251 = vunpack.c.l.b16 %v122
    %v252 = vunpack.c.h.b16 %v122
    %v253 = vunpack.c.l.b16 %v123
    %v254 = vunpack.c.h.b16 %v123
    %v255 = vunpack.c.l.b16 %v124
    %v256 = vunpack.c.h.b16 %v124
    %v257 = vunpack.c.l.b16 %v125
    %v258 = vunpack.c.h.b16 %v125
    %v259 = vunpack.c.l.b16 %v126
    %v260 = vunpack.c.h.b16 %v126
    %v261 = vunpack.c.l.b16 %v127
    %v262 = vunpack.c.h.b16 %v127
    %v263 = vunpack.c.l.b16 %v128
    %v264 = vunpack.c.h.b16 %v128
    %v265 = vunpack.c.l.b16 %v129
    %v266 = vunpack.c.h.b16 %v129
    %v267 = vunpack.c.l.b16 %v130
    %v268 = vunpack.c.h.b16 %v130
    %v269 = vunpack.c.l.b16 %v131
    %v270 = vunpack.c.h.b16 %v131
    %v271 = vunpack.c.l.b16 %v132
    %v272 = vunpack.c.h.b16 %v132
    %v273 = vunpack.c.l.b16 %v133
    %v274 = vunpack.c.h.b16 %v133
    %v275 = vunpack.c.l.b16 %v134
    %v276 = vunpack.c.h.b16 %v134
    %v277 = vunpack.c.l.b16 %v135
    %v278 = vunpack.c.h.b16 %v135
    %v279 = vunpack.c.l.b16 %v136
    %v280 = vunpack.c.h.b16 %v136
    %v281 = vunpack.c.l.b16 %v137
    %v282 = vunpack.c.h.b16 %v137
    %v283 = vunpack.c.l.b16 %v138
    %v284 = vunpack.c.h.b16 %v138
    %v285 = vunpack.c.l.b16 %v139
    %v286 = vunpack.c.h.b16 %v139
    %v287 = vunpack.c.l.b16 %v140
    %v288 = vunpack.c.h.b16 %v140
    %v289 = vunpack.c.l.b16 %v141
    %v290 = vunpack.c.h.b16 %v141
    %v291 = vunpack.c.l.b16 %v142
    %v292 = vunpack.c.h.b16 %v142
    %v293 = vunpack.c.l.b16 %v143
    %v294 = vunpack.c.h.b16 %v143
    %v295 = vunpack.c.l.b16 %v144
    %v296 = vunpack.c.h.b16 %v144
    %v297 = vunpack.c.l.b16 %v145
    %v298 = vunpack.c.h.b16 %v145
    %v299 = vunpack.c.l.b16 %v146
    %v300 = vunpack.c.h.b16 %v146
    %v301 = vunpack.c.l.b16 %v147
    %v302 = vunpack.c.h.b16 %v147
    %v303 = vunpack.c.l.b16 %v148
    %v304 = vunpack.c.h.b16 %v148
    %v305 = vunpack.c.l.b16 %v149
    %v306 = vunpack.c.h.b16 %v149
    %v307 = vunpack.c.l.b16 %v150
    %v308 = vunpack.c.h.b16 %v150
    %v309 = vunpack.c.l.b16 %v151
    %v310 = vunpack.c.h.b16 %v151
    %v311 = vunpack.c.l.b16 %v152
    %v312 = vunpack.c.h.b16 %v152
    %v313 = vunpack.c.l.b16 %v153
    %v314 = vunpack.c.h.b16 %v153
    %v315 = vunpack.c.l.b16 %v154
    %v316 = vunpack.c.h.b16 %v154
    %v317 = vunpack.c.l.b16 %v155
    %v318 = vunpack.c.h.b16 %v155
    %v319 = vunpack.c.l.b16 %v156
    %v320 = vunpack.c.h.b16 %v156
    %v321 = vunpack.c.l.b16 %v157
    %v322 = vunpack.c.h.b16 %v157
    %v323 = vunpack.c.l.b16 %v158
    %v324 = vunpack.c.h.b16 %v158
    %v325 = vunpack.c.l.b16 %v159
    %v326 = vunpack.c.h.b16 %v159
    %v327 = vunpack.c.l.b16 %v160
    %v328 = vunpack.c.h.b16 %v160
    %v329 = vunpack.c.l.b16 %v161
    %v330 = vunpack.c.h.b16 %v161
    %v331 = vunpack.c.l.b16 %v162
    %v332 = vunpack.c.h.b16 %v162
    %v333 = vunpack.c.l.b16 %v163
    %v334 = vunpack.c.h.b16 %v163
    %v335 = vunpack.c.l.b16 %v164
    %v336 = vunpack.c.h.b16 %v164
    %v337 = vpack.c.b16 %v243, %v241
    %v338 = vpack.c.b16 %v244, %v242
    %v339 = vpack.c.b16 %v247, %v245
    %v340 = vpack.c.b16 %v248, %v246
    %v341 = vpack.c.b16 %v251, %v249
    %v342 = vpack.c.b16 %v252, %v250
    %v343 = vpack.c.b16 %v255, %v253
    %v344 = vpack.c.b16 %v256, %v254
    %v345 = vpack.c.b16 %v259, %v257
    %v346 = vpack.c.b16 %v260, %v258
    %v347 = vpack.c.b16 %v263, %v261
    %v348 = vpack.c.b16 %v264, %v262
    %v349 = vpack.c.b16 %v267, %v265
    %v350 = vpack.c.b16 %v268, %v266
    %v351 = vpack.c.b16 %v271, %v269
    %v352 = vpack.c.b16 %v272, %v270
    %v353 = vpack.c.b16 %v275, %v273
    %v354 = vpack.c.b16 %v276, %v274
    %v355 = vpack.c.b16 %v279, %v277
    %v356 = vpack.c.b16 %v280, %v278
    %v357 = vpack.c.b16 %v283, %v281
    %v358 = vpack.c.b16 %v284, %v282
    %v359 = vpack.c.b16 %v287, %v285
    %v360 = vpack.c.b16 %v288, %v286
    %v361 = vpack.c.b16 %v291, %v289
    %v362 = vpack.c.b16 %v292, %v290
    %v363 = vpack.c.b16 %v295, %v293
    %v364 = vpack.c.b16 %v296, %v294
    %v365 = vpack.c.b16 %v299, %v297
    %v366 = vpack.c.b16 %v300, %v298
    %v367 = vpack.c.b16 %v303, %v301
    %v368 = vpack.c.b16 %v304, %v302
    %v369 = vpack.c.b16 %v307, %v305
    %v370 = vpack.c.b16 %v308, %v306
    %v371 = vpack.c.b16 %v311, %v309
    %v372 = vpack.c.b16 %v312, %v310
    %v373 = vpack.c.b16 %v315, %v313
    %v374 = vpack.c.b16 %v316, %v314
    %v375 = vpack.c.b16 %v319, %v317
    %v376 = vpack.c.b16 %v320, %v318
    %v377 = vpack.c.b16 %v323, %v321
    %v378 = vpack.c.b16 %v324, %v322
    %v379 = vpack.c.b16 %v327, %v325
    %v380 = vpack.c.b16 %v328, %v326
    %v381 = vpack.c.b16 %v331, %v329
    %v382 = vpack.c.b16 %v332, %v330
    %v383 = vpack.c.b16 %v335, %v333
    %v384 = vpack.c.b16 %v336, %v334
    %433 = vmatprep.subr.bf16.mxu0 %v338
    %434 = vmatpush1.bf16.msra.mxu0 %v337
    %435 = vmatprep.subr.bf16.mxu0 %v340
    %436 = vmatpush1.bf16.msra.mxu0 %v339
    %437 = vmatprep.subr.bf16.mxu0 %v342
    %438 = vmatpush1.bf16.msra.mxu0 %v341
    %439 = vmatprep.subr.bf16.mxu0 %v344
    %440 = vmatpush1.bf16.msra.mxu0 %v343
    %441 = vmatprep.subr.bf16.mxu0 %v346
    %442 = vmatpush1.bf16.msra.mxu0 %v345
    %443 = vmatprep.subr.bf16.mxu0 %v348
    %444 = vmatpush1.bf16.msra.mxu0 %v347
    %445 = vmatprep.subr.bf16.mxu0 %v350
    %446 = vmatpush1.bf16.msra.mxu0 %v349
    %447 = vmatprep.subr.bf16.mxu0 %v352
    %448 = vmatpush1.bf16.msra.mxu0 %v351
    %449 = vmatprep.subr.bf16.mxu0 %v354
    %450 = vmatpush1.bf16.msra.mxu0 %v353
    %451 = vmatprep.subr.bf16.mxu0 %v356
    %452 = vmatpush1.bf16.msra.mxu0 %v355
    %453 = vmatprep.subr.bf16.mxu0 %v358
    %454 = vmatpush1.bf16.msra.mxu0 %v357
    %455 = vmatprep.subr.bf16.mxu0 %v360
    %456 = vmatpush1.bf16.msra.mxu0 %v359
    %457 = vmatprep.subr.bf16.mxu0 %v362
    %458 = vmatpush1.bf16.msra.mxu0 %v361
    %459 = vmatprep.subr.bf16.mxu0 %v364
    %460 = vmatpush1.bf16.msra.mxu0 %v363
    %461 = vmatprep.subr.bf16.mxu0 %v366
    %462 = vmatpush1.bf16.msra.mxu0 %v365
    %463 = vmatprep.subr.bf16.mxu0 %v368
    %464 = vmatpush1.bf16.msra.mxu0 %v367
    %465 = vmatprep.mubr.bf16.mxu0 %v188
    %466 = vmatmul.mubr.bf16.gmra.mrb[0].mxu0 %v187
    %v467 = vpop.f32.mrb[0].mxu0
    %v468 = vadd.f32 %v170, %v467
    %v469 = vpop.f32.mrb[0].mxu0
    %v470 = vadd.f32 %v174, %v469
    %v471 = vpop.f32.mrb[0].mxu0
    %v472 = vadd.f32 %v170, %v471
    %v473 = vpop.f32.mrb[0].mxu0
    %v474 = vadd.f32 %v174, %v473
    %475 = vdwg.mxu0
    %476 = vmatprep.subr.bf16.mxu0 %v370
    %477 = vmatpush1.bf16.msra.mxu0 %v369
    %478 = vmatprep.subr.bf16.mxu0 %v372
    %479 = vmatpush1.bf16.msra.mxu0 %v371
    %480 = vmatprep.subr.bf16.mxu0 %v374
    %481 = vmatpush1.bf16.msra.mxu0 %v373
    %482 = vmatprep.subr.bf16.mxu0 %v376
    %483 = vmatpush1.bf16.msra.mxu0 %v375
    %484 = vmatprep.subr.bf16.mxu0 %v378
    %485 = vmatpush1.bf16.msra.mxu0 %v377
    %486 = vmatprep.subr.bf16.mxu0 %v380
    %487 = vmatpush1.bf16.msra.mxu0 %v379
    %488 = vmatprep.subr.bf16.mxu0 %v382
    %489 = vmatpush1.bf16.msra.mxu0 %v381
    %490 = vmatprep.subr.bf16.mxu0 %v384
    %491 = vmatpush1.bf16.msra.mxu0 %v383
    %492 = vmatprep.subr.bf16.mxu0 0
    %493 = vmatpush1.bf16.msra.mxu0 0
    %494 = vmatprep.subr.bf16.mxu0 0
    %495 = vmatpush1.bf16.msra.mxu0 0
    %496 = vmatprep.subr.bf16.mxu0 0
    %497 = vmatpush1.bf16.msra.mxu0 0
    %498 = vmatprep.subr.bf16.mxu0 0
    %499 = vmatpush1.bf16.msra.mxu0 0
    %500 = vmatprep.subr.bf16.mxu0 0
    %501 = vmatpush1.bf16.msra.mxu0 0
    %502 = vmatprep.subr.bf16.mxu0 0
    %503 = vmatpush1.bf16.msra.mxu0 0
    %504 = vmatprep.subr.bf16.mxu0 0
    %505 = vmatpush1.bf16.msra.mxu0 0
    %506 = vmatprep.subr.bf16.mxu0 0
    %507 = vmatpush1.bf16.msra.mxu0 0
    %508 = vmatprep.mubr.bf16.mxu0 0
    %509 = vmatmul.mubr.bf16.gmra.mrb[0].mxu0 %v189
    %v510 = vpop.f32.mrb[0].mxu0
    %v511 = vadd.f32 %v468, %v510
    %v512 = vpop.f32.mrb[0].mxu0
    %v513 = vadd.f32 %v470, %v512
    %v514 = vpop.f32.mrb[0].mxu0
    %v515 = vadd.f32 %v472, %v514
    %v516 = vpop.f32.mrb[0].mxu0
    %v517 = vadd.f32 %v474, %v516
    %518 = vdwg.mxu0
    %v519 = vmax.f32 %v511, 0.0
    %v520 = vmax.f32 %v513, 0.0
    %v521 = vmax.f32 %v515, 0.0
    %v522 = vmax.f32 %v517, 0.0
    %v523 = vpack.c.bf16 %v521, %v519
    %v524 = vpack.c.bf16 %v522, %v520
    %v525 = vld [vmem:[#allocation4] sm:$0xf]
    %v526 = vld [vmem:[#allocation4 + $0x4] sm:$0xf]
    %v527 = vld [vmem:[#allocation4 + $0x8] sm:$0xf]
    %v528 = vld [vmem:[#allocation4 + $0xc] sm:$0xf]
    %v529 = vld [vmem:[#allocation4 + $0x10] sm:$0xf]
    %v530 = vld [vmem:[#allocation4 + $0x14] sm:$0xf]
    %v531 = vld [vmem:[#allocation4 + $0x18] sm:$0xf]
    %v532 = vld [vmem:[#allocation4 + $0x1c] sm:$0xf]
    %v533 = vld [vmem:[#allocation4 + $0x20] sm:$0xf]
    %v534 = vld [vmem:[#allocation4 + $0x24] sm:$0xf]
    %v535 = vld [vmem:[#allocation4 + $0x28] sm:$0xf]
    %v536 = vld [vmem:[#allocation4 + $0x2c] sm:$0xf]
    %v537 = vld [vmem:[#allocation4 + $0x30] sm:$0xf]
    %v538 = vld [vmem:[#allocation4 + $0x34] sm:$0xf]
    %v539 = vld [vmem:[#allocation4 + $0x38] sm:$0xf]
    %v540 = vld [vmem:[#allocation4 + $0x3c] sm:$0xf]
    %v541 = vld [vmem:[#allocation4 + $0x40] sm:$0xf]
    %v542 = vld [vmem:[#allocation4 + $0x44] sm:$0xf]
    %v543 = vld [vmem:[#allocation4 + $0x48] sm:$0xf]
    %v544 = vld [vmem:[#allocation4 + $0x4c] sm:$0xf]
    %v545 = vld [vmem:[#allocation4 + $0x50] sm:$0xf]
    %v546 = vld [vmem:[#allocation4 + $0x54] sm:$0xf]
    %v547 = vld [vmem:[#allocation4 + $0x58] sm:$0xf]
    %v548 = vld [vmem:[#allocation4 + $0x5c] sm:$0xf]
    %v549 = vld [vmem:[#allocation4 + $0x60] sm:$0xf]
    %v550 = vld [vmem:[#allocation4 + $0x64] sm:$0xf]
    %v551 = vld [vmem:[#allocation4 + $0x68] sm:$0xf]
    %v552 = vld [vmem:[#allocation4 + $0x6c] sm:$0xf]
    %v553 = vld [vmem:[#allocation4 + $0x70] sm:$0xf]
    %v554 = vld [vmem:[#allocation4 + $0x74] sm:$0xf]
    %v555 = vld [vmem:[#allocation4 + $0x78] sm:$0xf]
    %v556 = vld [vmem:[#allocation4 + $0x7c] sm:$0xf]
    %v557 = vld [vmem:[%s4] sm:$0x1]
    %v559 = vlaneseq
    %v560 = vshrl.u32 %v559, 7
    %v561 = vsub.s32 0, %v560
    %v562 = vrot.slane %v557, %v561
    %v596 = vunpack.c.l.b16 %v525
    %v597 = vunpack.c.l.b16 %v526
    %v598 = vunpack.c.l.b16 %v527
    %v599 = vunpack.c.l.b16 %v528
    %v600 = vunpack.c.l.b16 %v529
    %v601 = vunpack.c.l.b16 %v530
    %v602 = vunpack.c.l.b16 %v531
    %v603 = vunpack.c.l.b16 %v532
    %v604 = vunpack.c.l.b16 %v533
    %v605 = vunpack.c.l.b16 %v534
    %v606 = vunpack.c.l.b16 %v535
    %v607 = vunpack.c.l.b16 %v536
    %v608 = vunpack.c.l.b16 %v537
    %v609 = vunpack.c.l.b16 %v538
    %v610 = vunpack.c.l.b16 %v539
    %v611 = vunpack.c.l.b16 %v540
    %v612 = vunpack.c.l.b16 %v541
    %v613 = vunpack.c.l.b16 %v542
    %v614 = vunpack.c.l.b16 %v543
    %v615 = vunpack.c.l.b16 %v544
    %v616 = vunpack.c.l.b16 %v545
    %v617 = vunpack.c.l.b16 %v546
    %v618 = vunpack.c.l.b16 %v547
    %v619 = vunpack.c.l.b16 %v548
    %v620 = vunpack.c.l.b16 %v549
    %v621 = vunpack.c.l.b16 %v550
    %v622 = vunpack.c.l.b16 %v551
    %v623 = vunpack.c.l.b16 %v552
    %v624 = vunpack.c.l.b16 %v553
    %v625 = vunpack.c.l.b16 %v554
    %v626 = vunpack.c.l.b16 %v555
    %v627 = vunpack.c.l.b16 %v556
    %v628 = vpack.c.b16 %v597, %v596
    %v629 = vpack.c.b16 %v599, %v598
    %v630 = vpack.c.b16 %v601, %v600
    %v631 = vpack.c.b16 %v603, %v602
    %v632 = vpack.c.b16 %v605, %v604
    %v633 = vpack.c.b16 %v607, %v606
    %v634 = vpack.c.b16 %v609, %v608
    %v635 = vpack.c.b16 %v611, %v610
    %v636 = vpack.c.b16 %v613, %v612
    %v637 = vpack.c.b16 %v615, %v614
    %v638 = vpack.c.b16 %v617, %v616
    %v639 = vpack.c.b16 %v619, %v618
    %v640 = vpack.c.b16 %v621, %v620
    %v641 = vpack.c.b16 %v623, %v622
    %v642 = vpack.c.b16 %v625, %v624
    %v643 = vpack.c.b16 %v627, %v626
    %660 = vmatprep.subr.bf16.mxu0 0
    %661 = vmatpush1.bf16.msra.mxu0 %v628
    %662 = vmatprep.subr.bf16.mxu0 0
    %663 = vmatpush1.bf16.msra.mxu0 %v629
    %664 = vmatprep.subr.bf16.mxu0 0
    %665 = vmatpush1.bf16.msra.mxu0 %v630
    %666 = vmatprep.subr.bf16.mxu0 0
    %667 = vmatpush1.bf16.msra.mxu0 %v631
    %668 = vmatprep.subr.bf16.mxu0 0
    %669 = vmatpush1.bf16.msra.mxu0 %v632
    %670 = vmatprep.subr.bf16.mxu0 0
    %671 = vmatpush1.bf16.msra.mxu0 %v633
    %672 = vmatprep.subr.bf16.mxu0 0
    %673 = vmatpush1.bf16.msra.mxu0 %v634
    %674 = vmatprep.subr.bf16.mxu0 0
    %675 = vmatpush1.bf16.msra.mxu0 %v635
    %676 = vmatprep.subr.bf16.mxu0 0
    %677 = vmatpush1.bf16.msra.mxu0 %v636
    %678 = vmatprep.subr.bf16.mxu0 0
    %679 = vmatpush1.bf16.msra.mxu0 %v637
    %680 = vmatprep.subr.bf16.mxu0 0
    %681 = vmatpush1.bf16.msra.mxu0 %v638
    %682 = vmatprep.subr.bf16.mxu0 0
    %683 = vmatpush1.bf16.msra.mxu0 %v639
    %684 = vmatprep.subr.bf16.mxu0 0
    %685 = vmatpush1.bf16.msra.mxu0 %v640
    %686 = vmatprep.subr.bf16.mxu0 0
    %687 = vmatpush1.bf16.msra.mxu0 %v641
    %688 = vmatprep.subr.bf16.mxu0 0
    %689 = vmatpush1.bf16.msra.mxu0 %v642
    %690 = vmatprep.subr.bf16.mxu0 0
    %691 = vmatpush1.bf16.msra.mxu0 %v643
    %692 = vmatprep.mubr.bf16.mxu0 %v524
    %693 = vmatmul.mubr.bf16.gmra.mrb[0].mxu0 %v523
    %v694 = vpop.f32.mrb[0].mxu0
    %v695 = vadd.f32 %v562, %v694
    %v696 = vpop.f32.mrb[0].mxu0
    %v697 = vpop.f32.mrb[0].mxu0
    %v698 = vadd.f32 %v562, %v697
    %v699 = vpop.f32.mrb[0].mxu0
    %700 = vdwg.mxu0
    %v701 = vmax.f32 %v695, 0.0
    %v702 = vmax.f32 %v698, 0.0
    %v703 = vpack.c.bf16 %v702, %v701
    %v704 = vld [vmem:[%s5] sm:$0xf]
    %v705 = vld [vmem:[%s5 + $0x4] sm:$0xf]
    %v706 = vld [vmem:[%s5 + $0x8] sm:$0xf]
    %v707 = vld [vmem:[%s5 + $0xc] sm:$0xf]
    %v708 = vld [vmem:[%s5 + $0x10] sm:$0xf]
    %v709 = vld [vmem:[%s5 + $0x14] sm:$0xf]
    %v710 = vld [vmem:[%s5 + $0x18] sm:$0xf]
    %v711 = vld [vmem:[%s5 + $0x1c] sm:$0xf]
    %v712 = vld [vmem:[%s5 + $0x20] sm:$0xf]
    %v713 = vld [vmem:[%s5 + $0x24] sm:$0xf]
    %v714 = vld [vmem:[%s5 + $0x28] sm:$0xf]
    %v715 = vld [vmem:[%s5 + $0x2c] sm:$0xf]
    %v716 = vld [vmem:[%s5 + $0x30] sm:$0xf]
    %v717 = vld [vmem:[%s5 + $0x34] sm:$0xf]
    %v718 = vld [vmem:[%s5 + $0x38] sm:$0xf]
    %v719 = vld [vmem:[%s5 + $0x3c] sm:$0xf]
    %v720 = vld [vmem:[%s6] sm:$0x1]
    %v722 = vlaneseq
    %v723 = vshrl.u32 %v722, 7
    %v724 = vsub.s32 0, %v723
    %v725 = vrot.slane %v720, %v724
    %v743 = vunpack.c.l.b16 %v704
    %v744 = vunpack.c.l.b16 %v705
    %v745 = vunpack.c.l.b16 %v706
    %v746 = vunpack.c.l.b16 %v707
    %v747 = vunpack.c.l.b16 %v708
    %v748 = vunpack.c.l.b16 %v709
    %v749 = vunpack.c.l.b16 %v710
    %v750 = vunpack.c.l.b16 %v711
    %v751 = vunpack.c.l.b16 %v712
    %v752 = vunpack.c.l.b16 %v713
    %v753 = vunpack.c.l.b16 %v714
    %v754 = vunpack.c.l.b16 %v715
    %v755 = vunpack.c.l.b16 %v716
    %v756 = vunpack.c.l.b16 %v717
    %v757 = vunpack.c.l.b16 %v718
    %v758 = vunpack.c.l.b16 %v719
    %v759 = vpack.c.b16 %v744, %v743
    %v760 = vpack.c.b16 %v746, %v745
    %v761 = vpack.c.b16 %v748, %v747
    %v762 = vpack.c.b16 %v750, %v749
    %v763 = vpack.c.b16 %v752, %v751
    %v764 = vpack.c.b16 %v754, %v753
    %v765 = vpack.c.b16 %v756, %v755
    %v766 = vpack.c.b16 %v758, %v757
    %775 = vmatprep.subr.bf16.mxu0 0
    %776 = vmatpush1.bf16.msra.mxu0 %v759
    %777 = vmatprep.subr.bf16.mxu0 0
    %778 = vmatpush1.bf16.msra.mxu0 %v760
    %779 = vmatprep.subr.bf16.mxu0 0
    %780 = vmatpush1.bf16.msra.mxu0 %v761
    %781 = vmatprep.subr.bf16.mxu0 0
    %782 = vmatpush1.bf16.msra.mxu0 %v762
    %783 = vmatprep.subr.bf16.mxu0 0
    %784 = vmatpush1.bf16.msra.mxu0 %v763
    %785 = vmatprep.subr.bf16.mxu0 0
    %786 = vmatpush1.bf16.msra.mxu0 %v764
    %787 = vmatprep.subr.bf16.mxu0 0
    %788 = vmatpush1.bf16.msra.mxu0 %v765
    %789 = vmatprep.subr.bf16.mxu0 0
    %790 = vmatpush1.bf16.msra.mxu0 %v766
    %791 = vmatprep.subr.bf16.mxu0 0
    %792 = vmatpush1.bf16.msra.mxu0 0
    %793 = vmatprep.subr.bf16.mxu0 0
    %794 = vmatpush1.bf16.msra.mxu0 0
    %795 = vmatprep.subr.bf16.mxu0 0
    %796 = vmatpush1.bf16.msra.mxu0 0
    %797 = vmatprep.subr.bf16.mxu0 0
    %798 = vmatpush1.bf16.msra.mxu0 0
    %799 = vmatprep.subr.bf16.mxu0 0
    %800 = vmatpush1.bf16.msra.mxu0 0
    %801 = vmatprep.subr.bf16.mxu0 0
    %802 = vmatpush1.bf16.msra.mxu0 0
    %803 = vmatprep.subr.bf16.mxu0 0
    %804 = vmatpush1.bf16.msra.mxu0 0
    %805 = vmatprep.subr.bf16.mxu0 0
    %806 = vmatpush1.bf16.msra.mxu0 0
    %807 = vmatprep.mubr.bf16.mxu0 0
    %808 = vmatmul.mubr.bf16.gmra.mrb[0].mxu0 %v703
    %v809 = vpop.f32.mrb[0].mxu0
    %v810 = vadd.f32 %v725, %v809
    %v811 = vpop.f32.mrb[0].mxu0
    %v812 = vpop.f32.mrb[0].mxu0
    %v813 = vadd.f32 %v725, %v812
    %v814 = vpop.f32.mrb[0].mxu0
    %815 = vdwg.mxu0
    %v816 = vmax.f32 %v810, 0.0
    %v817 = vmax.f32 %v813, 0.0
    %v818 = vpack.c.bf16 %v817, %v816
    %v819 = vld [vmem:[#allocation6] sm:$0xf]
    %v820 = vld [vmem:[#allocation6 + $0x4] sm:$0xf]
    %v821 = vld [vmem:[#allocation6 + $0x8] sm:$0xf]
    %v822 = vld [vmem:[#allocation6 + $0xc] sm:$0xf]
    %v823 = vld [vmem:[#allocation6 + $0x10] sm:$0xf]
    %v824 = vld [vmem:[#allocation6 + $0x14] sm:$0xf]
    %v825 = vld [vmem:[#allocation6 + $0x18] sm:$0xf]
    %v826 = vld [vmem:[#allocation6 + $0x1c] sm:$0xf]
    %v827 = vld [vmem:[#allocation6 + $0x20] sm:$0xf]
    %v828 = vld [vmem:[#allocation6 + $0x24] sm:$0xf]
    %v829 = vld [vmem:[#allocation6 + $0x28] sm:$0xf]
    %v830 = vld [vmem:[#allocation6 + $0x2c] sm:$0xf]
    %v831 = vld [vmem:[#allocation6 + $0x30] sm:$0xf]
    %v832 = vld [vmem:[#allocation6 + $0x34] sm:$0xf]
    %v833 = vld [vmem:[#allocation6 + $0x38] sm:$0xf]
    %v834 = vld [vmem:[#allocation6 + $0x3c] sm:$0xf]
    %v835 = vld [vmem:[%s8] sm:$0x1]
    %v837 = vlaneseq
    %v838 = vshrl.u32 %v837, 7
    %v839 = vsub.s32 0, %v838
    %v840 = vrot.slane %v835, %v839
    %v858 = vunpack.c.l.b16 %v819
    %v859 = vunpack.c.l.b16 %v820
    %v860 = vunpack.c.l.b16 %v821
    %v861 = vunpack.c.l.b16 %v822
    %v862 = vunpack.c.l.b16 %v823
    %v863 = vunpack.c.l.b16 %v824
    %v864 = vunpack.c.l.b16 %v825
    %v865 = vunpack.c.l.b16 %v826
    %v866 = vunpack.c.l.b16 %v827
    %v867 = vunpack.c.l.b16 %v828
    %v868 = vunpack.c.l.b16 %v829
    %v869 = vunpack.c.l.b16 %v830
    %v870 = vunpack.c.l.b16 %v831
    %v871 = vunpack.c.l.b16 %v832
    %v872 = vunpack.c.l.b16 %v833
    %v873 = vunpack.c.l.b16 %v834
    %v874 = vpack.c.b16 %v859, %v858
    %v875 = vpack.c.b16 %v861, %v860
    %v876 = vpack.c.b16 %v863, %v862
    %v877 = vpack.c.b16 %v865, %v864
    %v878 = vpack.c.b16 %v867, %v866
    %v879 = vpack.c.b16 %v869, %v868
    %v880 = vpack.c.b16 %v871, %v870
    %v881 = vpack.c.b16 %v873, %v872
    %890 = vmatprep.subr.bf16.mxu0 0
    %891 = vmatpush1.bf16.msra.mxu0 %v874
    %892 = vmatprep.subr.bf16.mxu0 0
    %893 = vmatpush1.bf16.msra.mxu0 %v875
    %894 = vmatprep.subr.bf16.mxu0 0
    %895 = vmatpush1.bf16.msra.mxu0 %v876
    %896 = vmatprep.subr.bf16.mxu0 0
    %897 = vmatpush1.bf16.msra.mxu0 %v877
    %898 = vmatprep.subr.bf16.mxu0 0
    %899 = vmatpush1.bf16.msra.mxu0 %v878
    %900 = vmatprep.subr.bf16.mxu0 0
    %901 = vmatpush1.bf16.msra.mxu0 %v879
    %902 = vmatprep.subr.bf16.mxu0 0
    %903 = vmatpush1.bf16.msra.mxu0 %v880
    %904 = vmatprep.subr.bf16.mxu0 0
    %905 = vmatpush1.bf16.msra.mxu0 %v881
    %906 = vmatprep.subr.bf16.mxu0 0
    %907 = vmatpush1.bf16.msra.mxu0 0
    %908 = vmatprep.subr.bf16.mxu0 0
    %909 = vmatpush1.bf16.msra.mxu0 0
    %910 = vmatprep.subr.bf16.mxu0 0
    %911 = vmatpush1.bf16.msra.mxu0 0
    %912 = vmatprep.subr.bf16.mxu0 0
    %913 = vmatpush1.bf16.msra.mxu0 0
    %914 = vmatprep.subr.bf16.mxu0 0
    %915 = vmatpush1.bf16.msra.mxu0 0
    %916 = vmatprep.subr.bf16.mxu0 0
    %917 = vmatpush1.bf16.msra.mxu0 0
    %918 = vmatprep.subr.bf16.mxu0 0
    %919 = vmatpush1.bf16.msra.mxu0 0
    %920 = vmatprep.subr.bf16.mxu0 0
    %921 = vmatpush1.bf16.msra.mxu0 0
    %922 = vmatprep.mubr.bf16.mxu0 0
    %923 = vmatmul.mubr.bf16.gmra.mrb[0].mxu0 %v818
    %v924 = vpop.f32.mrb[0].mxu0
    %v925 = vadd.f32 %v840, %v924
    %v926 = vpop.f32.mrb[0].mxu0
    %v927 = vpop.f32.mrb[0].mxu0
    %v928 = vadd.f32 %v840, %v927
    %v929 = vpop.f32.mrb[0].mxu0
    %930 = vdwg.mxu0
    %v931 = vmax.f32 %v925, 0.0
    %v932 = vmax.f32 %v928, 0.0
    %v933 = vpack.c.bf16 %v932, %v931
    %v934 = vld [vmem:[#allocation7] sm:$0xff]
    %v935 = vld [vmem:[#allocation7 + $0x8] sm:$0xff]
    %v936 = vld [vmem:[#allocation7 + $0x10] sm:$0xff]
    %v937 = vld [vmem:[#allocation7 + $0x18] sm:$0xff]
    %v938 = vld [vmem:[#allocation7 + $0x20] sm:$0xff]
    %v939 = vld [vmem:[#allocation7 + $0x28] sm:$0xff]
    %v940 = vld [vmem:[#allocation7 + $0x30] sm:$0xff]
    %v941 = vld [vmem:[#allocation7 + $0x38] sm:$0xff]
    %v942 = vld [vmem:[#allocation7 + $0x40] sm:$0xff]
    %v943 = vld [vmem:[#allocation7 + $0x48] sm:$0xff]
    %v944 = vld [vmem:[#allocation7 + $0x50] sm:$0xff]
    %v945 = vld [vmem:[#allocation7 + $0x58] sm:$0xff]
    %v946 = vld [vmem:[#allocation7 + $0x60] sm:$0xff]
    %v947 = vld [vmem:[#allocation7 + $0x68] sm:$0xff]
    %v948 = vld [vmem:[#allocation7 + $0x70] sm:$0xff]
    %v949 = vld [vmem:[#allocation7 + $0x78] sm:$0xff]
    %v950 = vld [vmem:[%s10] sm:$0x3]
    %v952 = vlaneseq
    %v953 = vshrl.u32 %v952, 7
    %v954 = vsub.s32 0, %v953
    %v955 = vrot.slane %v950, %v954
    %v956 = vlaneseq
    %v957 = vshrl.u32 %v956, 7
    %v958 = vsub.s32 1, %v957
    %v959 = vrot.slane %v950, %v958
    %v978 = vunpack.c.l.b16 %v934
    %v979 = vunpack.c.h.b16 %v934
    %v980 = vunpack.c.l.b16 %v935
    %v981 = vunpack.c.h.b16 %v935
    %v982 = vunpack.c.l.b16 %v936
    %v983 = vunpack.c.h.b16 %v936
    %v984 = vunpack.c.l.b16 %v937
    %v985 = vunpack.c.h.b16 %v937
    %v986 = vunpack.c.l.b16 %v938
    %v987 = vunpack.c.h.b16 %v938
    %v988 = vunpack.c.l.b16 %v939
    %v989 = vunpack.c.h.b16 %v939
    %v990 = vunpack.c.l.b16 %v940
    %v991 = vunpack.c.h.b16 %v940
    %v992 = vunpack.c.l.b16 %v941
    %v993 = vunpack.c.h.b16 %v941
    %v994 = vunpack.c.l.b16 %v942
    %v995 = vunpack.c.h.b16 %v942
    %v996 = vunpack.c.l.b16 %v943
    %v997 = vunpack.c.h.b16 %v943
    %v998 = vunpack.c.l.b16 %v944
    %v999 = vunpack.c.h.b16 %v944
    %v1000 = vunpack.c.l.b16 %v945
    %v1001 = vunpack.c.h.b16 %v945
    %v1002 = vunpack.c.l.b16 %v946
    %v1003 = vunpack.c.h.b16 %v946
    %v1004 = vunpack.c.l.b16 %v947
    %v1005 = vunpack.c.h.b16 %v947
    %v1006 = vunpack.c.l.b16 %v948
    %v1007 = vunpack.c.h.b16 %v948
    %v1008 = vunpack.c.l.b16 %v949
    %v1009 = vunpack.c.h.b16 %v949
    %v1010 = vpack.c.b16 %v980, %v978
    %v1011 = vpack.c.b16 %v981, %v979
    %v1012 = vpack.c.b16 %v984, %v982
    %v1013 = vpack.c.b16 %v985, %v983
    %v1014 = vpack.c.b16 %v988, %v986
    %v1015 = vpack.c.b16 %v989, %v987
    %v1016 = vpack.c.b16 %v992, %v990
    %v1017 = vpack.c.b16 %v993, %v991
    %v1018 = vpack.c.b16 %v996, %v994
    %v1019 = vpack.c.b16 %v997, %v995
    %v1020 = vpack.c.b16 %v1000, %v998
    %v1021 = vpack.c.b16 %v1001, %v999
    %v1022 = vpack.c.b16 %v1004, %v1002
    %v1023 = vpack.c.b16 %v1005, %v1003
    %v1024 = vpack.c.b16 %v1008, %v1006
    %v1025 = vpack.c.b16 %v1009, %v1007
    %1042 = vmatprep.subr.bf16.mxu0 %v1011
    %1043 = vmatpush1.bf16.msra.mxu0 %v1010
    %1044 = vmatprep.subr.bf16.mxu0 %v1013
    %1045 = vmatpush1.bf16.msra.mxu0 %v1012
    %1046 = vmatprep.subr.bf16.mxu0 %v1015
    %1047 = vmatpush1.bf16.msra.mxu0 %v1014
    %1048 = vmatprep.subr.bf16.mxu0 %v1017
    %1049 = vmatpush1.bf16.msra.mxu0 %v1016
    %1050 = vmatprep.subr.bf16.mxu0 %v1019
    %1051 = vmatpush1.bf16.msra.mxu0 %v1018
    %1052 = vmatprep.subr.bf16.mxu0 %v1021
    %1053 = vmatpush1.bf16.msra.mxu0 %v1020
    %1054 = vmatprep.subr.bf16.mxu0 %v1023
    %1055 = vmatpush1.bf16.msra.mxu0 %v1022
    %1056 = vmatprep.subr.bf16.mxu0 %v1025
    %1057 = vmatpush1.bf16.msra.mxu0 %v1024
    %1058 = vmatprep.subr.bf16.mxu0 0
    %1059 = vmatpush1.bf16.msra.mxu0 0
    %1060 = vmatprep.subr.bf16.mxu0 0
    %1061 = vmatpush1.bf16.msra.mxu0 0
    %1062 = vmatprep.subr.bf16.mxu0 0
    %1063 = vmatpush1.bf16.msra.mxu0 0
    %1064 = vmatprep.subr.bf16.mxu0 0
    %1065 = vmatpush1.bf16.msra.mxu0 0
    %1066 = vmatprep.subr.bf16.mxu0 0
    %1067 = vmatpush1.bf16.msra.mxu0 0
    %1068 = vmatprep.subr.bf16.mxu0 0
    %1069 = vmatpush1.bf16.msra.mxu0 0
    %1070 = vmatprep.subr.bf16.mxu0 0
    %1071 = vmatpush1.bf16.msra.mxu0 0
    %1072 = vmatprep.subr.bf16.mxu0 0
    %1073 = vmatpush1.bf16.msra.mxu0 0
    %1074 = vmatprep.mubr.bf16.mxu0 0
    %1075 = vmatmul.mubr.bf16.gmra.mrb[0].mxu0 %v933
    %v1076 = vpop.f32.mrb[0].mxu0
    %v1077 = vadd.f32 %v955, %v1076
    %v1078 = vpop.f32.mrb[0].mxu0
    %v1079 = vadd.f32 %v959, %v1078
    %v1080 = vpop.f32.mrb[0].mxu0
    %v1081 = vadd.f32 %v955, %v1080
    %v1082 = vpop.f32.mrb[0].mxu0
    %v1083 = vadd.f32 %v959, %v1082
    %1084 = vdwg.mxu0
    %v1085 = vmax.f32 %v1077, 0.0
    %v1086 = vmax.f32 %v1079, 0.0
    %v1087 = vmax.f32 %v1081, 0.0
    %v1088 = vmax.f32 %v1083, 0.0
    %v1089 = vpack.c.bf16 %v1087, %v1085
    %v1090 = vpack.c.bf16 %v1088, %v1086
    %v1091 = vld [vmem:[#allocation9] sm:$0xff]
    %v1092 = vld [vmem:[#allocation9 + $0x8] sm:$0xf]
    %v1093 = vld [vmem:[#allocation9 + $0xc] sm:$0xff]
    %v1094 = vld [vmem:[#allocation9 + $0x14] sm:$0xf]
    %v1095 = vld [vmem:[#allocation9 + $0x18] sm:$0xff]
    %v1096 = vld [vmem:[#allocation9 + $0x20] sm:$0xf]
    %v1097 = vld [vmem:[#allocation9 + $0x24] sm:$0xff]
    %v1098 = vld [vmem:[#allocation9 + $0x2c] sm:$0xf]
    %v1099 = vld [vmem:[#allocation9 + $0x30] sm:$0xff]
    %v1100 = vld [vmem:[#allocation9 + $0x38] sm:$0xf]
    %v1101 = vld [vmem:[#allocation9 + $0x3c] sm:$0xff]
    %v1102 = vld [vmem:[#allocation9 + $0x44] sm:$0xf]
    %v1103 = vld [vmem:[#allocation9 + $0x48] sm:$0xff]
    %v1104 = vld [vmem:[#allocation9 + $0x50] sm:$0xf]
    %v1105 = vld [vmem:[#allocation9 + $0x54] sm:$0xff]
    %v1106 = vld [vmem:[#allocation9 + $0x5c] sm:$0xf]
    %v1107 = vld [vmem:[#allocation9 + $0x60] sm:$0xff]
    %v1108 = vld [vmem:[#allocation9 + $0x68] sm:$0xf]
    %v1109 = vld [vmem:[#allocation9 + $0x6c] sm:$0xff]
    %v1110 = vld [vmem:[#allocation9 + $0x74] sm:$0xf]
    %v1111 = vld [vmem:[#allocation9 + $0x78] sm:$0xff]
    %v1112 = vld [vmem:[#allocation9 + $0x80] sm:$0xf]
    %v1113 = vld [vmem:[#allocation9 + $0x84] sm:$0xff]
    %v1114 = vld [vmem:[#allocation9 + $0x8c] sm:$0xf]
    %v1115 = vld [vmem:[#allocation9 + $0x90] sm:$0xff]
    %v1116 = vld [vmem:[#allocation9 + $0x98] sm:$0xf]
    %v1117 = vld [vmem:[#allocation9 + $0x9c] sm:$0xff]
    %v1118 = vld [vmem:[#allocation9 + $0xa4] sm:$0xf]
    %v1119 = vld [vmem:[#allocation9 + $0xa8] sm:$0xff]
    %v1120 = vld [vmem:[#allocation9 + $0xb0] sm:$0xf]
    %v1121 = vld [vmem:[#allocation9 + $0xb4] sm:$0xff]
    %v1122 = vld [vmem:[#allocation9 + $0xbc] sm:$0xf]
    %v1123 = vld [vmem:[#allocation9 + $0xc0] sm:$0xff]
    %v1124 = vld [vmem:[#allocation9 + $0xc8] sm:$0xf]
    %v1125 = vld [vmem:[#allocation9 + $0xcc] sm:$0xff]
    %v1126 = vld [vmem:[#allocation9 + $0xd4] sm:$0xf]
    %v1127 = vld [vmem:[#allocation9 + $0xd8] sm:$0xff]
    %v1128 = vld [vmem:[#allocation9 + $0xe0] sm:$0xf]
    %v1129 = vld [vmem:[#allocation9 + $0xe4] sm:$0xff]
    %v1130 = vld [vmem:[#allocation9 + $0xec] sm:$0xf]
    %v1131 = vld [vmem:[#allocation9 + $0xf0] sm:$0xff]
    %v1132 = vld [vmem:[#allocation9 + $0xf8] sm:$0xf]
    %v1133 = vld [vmem:[#allocation9 + $0xfc] sm:$0xff]
    %v1134 = vld [vmem:[#allocation9 + $0x104] sm:$0xf]
    %v1135 = vld [vmem:[#allocation9 + $0x108] sm:$0xff]
    %v1136 = vld [vmem:[#allocation9 + $0x110] sm:$0xf]
    %v1137 = vld [vmem:[#allocation9 + $0x114] sm:$0xff]
    %v1138 = vld [vmem:[#allocation9 + $0x11c] sm:$0xf]
    %v1139 = vld [vmem:[#allocation9 + $0x120] sm:$0xff]
    %v1140 = vld [vmem:[#allocation9 + $0x128] sm:$0xf]
    %v1141 = vld [vmem:[#allocation9 + $0x12c] sm:$0xff]
    %v1142 = vld [vmem:[#allocation9 + $0x134] sm:$0xf]
    %v1143 = vld [vmem:[#allocation9 + $0x138] sm:$0xff]
    %v1144 = vld [vmem:[#allocation9 + $0x140] sm:$0xf]
    %v1145 = vld [vmem:[#allocation9 + $0x144] sm:$0xff]
    %v1146 = vld [vmem:[#allocation9 + $0x14c] sm:$0xf]
    %v1147 = vld [vmem:[#allocation9 + $0x150] sm:$0xff]
    %v1148 = vld [vmem:[#allocation9 + $0x158] sm:$0xf]
    %v1149 = vld [vmem:[#allocation9 + $0x15c] sm:$0xff]
    %v1150 = vld [vmem:[#allocation9 + $0x164] sm:$0xf]
    %v1151 = vld [vmem:[#allocation9 + $0x168] sm:$0xff]
    %v1152 = vld [vmem:[#allocation9 + $0x170] sm:$0xf]
    %v1153 = vld [vmem:[#allocation9 + $0x174] sm:$0xff]
    %v1154 = vld [vmem:[#allocation9 + $0x17c] sm:$0xf]
    %v1155 = vld [vmem:[%s12] sm:$0x7]
    %v1157 = vlaneseq
    %v1158 = vshrl.u32 %v1157, 7
    %v1159 = vsub.s32 0, %v1158
    %v1160 = vrot.slane %v1155, %v1159
    %v1161 = vlaneseq
    %v1162 = vshrl.u32 %v1161, 7
    %v1163 = vsub.s32 1, %v1162
    %v1164 = vrot.slane %v1155, %v1163
    %v1165 = vlaneseq
    %v1166 = vshrl.u32 %v1165, 7
    %v1167 = vsub.s32 2, %v1166
    %v1168 = vrot.slane %v1155, %v1167
    %v1236 = vunpack.c.l.b16 %v1091
    %v1237 = vunpack.c.h.b16 %v1091
    %v1238 = vunpack.c.l.b16 %v1092
    %v1239 = vunpack.c.l.b16 %v1093
    %v1240 = vunpack.c.h.b16 %v1093
    %v1241 = vunpack.c.l.b16 %v1094
    %v1242 = vunpack.c.l.b16 %v1095
    %v1243 = vunpack.c.h.b16 %v1095
    %v1244 = vunpack.c.l.b16 %v1096
    %v1245 = vunpack.c.l.b16 %v1097
    %v1246 = vunpack.c.h.b16 %v1097
    %v1247 = vunpack.c.l.b16 %v1098
    %v1248 = vunpack.c.l.b16 %v1099
    %v1249 = vunpack.c.h.b16 %v1099
    %v1250 = vunpack.c.l.b16 %v1100
    %v1251 = vunpack.c.l.b16 %v1101
    %v1252 = vunpack.c.h.b16 %v1101
    %v1253 = vunpack.c.l.b16 %v1102
    %v1254 = vunpack.c.l.b16 %v1103
    %v1255 = vunpack.c.h.b16 %v1103
    %v1256 = vunpack.c.l.b16 %v1104
    %v1257 = vunpack.c.l.b16 %v1105
    %v1258 = vunpack.c.h.b16 %v1105
    %v1259 = vunpack.c.l.b16 %v1106
    %v1260 = vunpack.c.l.b16 %v1107
    %v1261 = vunpack.c.h.b16 %v1107
    %v1262 = vunpack.c.l.b16 %v1108
    %v1263 = vunpack.c.l.b16 %v1109
    %v1264 = vunpack.c.h.b16 %v1109
    %v1265 = vunpack.c.l.b16 %v1110
    %v1266 = vunpack.c.l.b16 %v1111
    %v1267 = vunpack.c.h.b16 %v1111
    %v1268 = vunpack.c.l.b16 %v1112
    %v1269 = vunpack.c.l.b16 %v1113
    %v1270 = vunpack.c.h.b16 %v1113
    %v1271 = vunpack.c.l.b16 %v1114
    %v1272 = vunpack.c.l.b16 %v1115
    %v1273 = vunpack.c.h.b16 %v1115
    %v1274 = vunpack.c.l.b16 %v1116
    %v1275 = vunpack.c.l.b16 %v1117
    %v1276 = vunpack.c.h.b16 %v1117
    %v1277 = vunpack.c.l.b16 %v1118
    %v1278 = vunpack.c.l.b16 %v1119
    %v1279 = vunpack.c.h.b16 %v1119
    %v1280 = vunpack.c.l.b16 %v1120
    %v1281 = vunpack.c.l.b16 %v1121
    %v1282 = vunpack.c.h.b16 %v1121
    %v1283 = vunpack.c.l.b16 %v1122
    %v1284 = vunpack.c.l.b16 %v1123
    %v1285 = vunpack.c.h.b16 %v1123
    %v1286 = vunpack.c.l.b16 %v1124
    %v1287 = vunpack.c.l.b16 %v1125
    %v1288 = vunpack.c.h.b16 %v1125
    %v1289 = vunpack.c.l.b16 %v1126
    %v1290 = vunpack.c.l.b16 %v1127
    %v1291 = vunpack.c.h.b16 %v1127
    %v1292 = vunpack.c.l.b16 %v1128
    %v1293 = vunpack.c.l.b16 %v1129
    %v1294 = vunpack.c.h.b16 %v1129
    %v1295 = vunpack.c.l.b16 %v1130
    %v1296 = vunpack.c.l.b16 %v1131
    %v1297 = vunpack.c.h.b16 %v1131
    %v1298 = vunpack.c.l.b16 %v1132
    %v1299 = vunpack.c.l.b16 %v1133
    %v1300 = vunpack.c.h.b16 %v1133
    %v1301 = vunpack.c.l.b16 %v1134
    %v1302 = vunpack.c.l.b16 %v1135
    %v1303 = vunpack.c.h.b16 %v1135
    %v1304 = vunpack.c.l.b16 %v1136
    %v1305 = vunpack.c.l.b16 %v1137
    %v1306 = vunpack.c.h.b16 %v1137
    %v1307 = vunpack.c.l.b16 %v1138
    %v1308 = vunpack.c.l.b16 %v1139
    %v1309 = vunpack.c.h.b16 %v1139
    %v1310 = vunpack.c.l.b16 %v1140
    %v1311 = vunpack.c.l.b16 %v1141
    %v1312 = vunpack.c.h.b16 %v1141
    %v1313 = vunpack.c.l.b16 %v1142
    %v1314 = vunpack.c.l.b16 %v1143
    %v1315 = vunpack.c.h.b16 %v1143
    %v1316 = vunpack.c.l.b16 %v1144
    %v1317 = vunpack.c.l.b16 %v1145
    %v1318 = vunpack.c.h.b16 %v1145
    %v1319 = vunpack.c.l.b16 %v1146
    %v1320 = vunpack.c.l.b16 %v1147
    %v1321 = vunpack.c.h.b16 %v1147
    %v1322 = vunpack.c.l.b16 %v1148
    %v1323 = vunpack.c.l.b16 %v1149
    %v1324 = vunpack.c.h.b16 %v1149
    %v1325 = vunpack.c.l.b16 %v1150
    %v1326 = vunpack.c.l.b16 %v1151
    %v1327 = vunpack.c.h.b16 %v1151
    %v1328 = vunpack.c.l.b16 %v1152
    %v1329 = vunpack.c.l.b16 %v1153
    %v1330 = vunpack.c.h.b16 %v1153
    %v1331 = vunpack.c.l.b16 %v1154
    %v1332 = vpack.c.b16 %v1239, %v1236
    %v1333 = vpack.c.b16 %v1240, %v1237
    %v1334 = vpack.c.b16 %v1241, %v1238
    %v1335 = vpack.c.b16 %v1245, %v1242
    %v1336 = vpack.c.b16 %v1246, %v1243
    %v1337 = vpack.c.b16 %v1247, %v1244
    %v1338 = vpack.c.b16 %v1251, %v1248
    %v1339 = vpack.c.b16 %v1252, %v1249
    %v1340 = vpack.c.b16 %v1253, %v1250
    %v1341 = vpack.c.b16 %v1257, %v1254
    %v1342 = vpack.c.b16 %v1258, %v1255
    %v1343 = vpack.c.b16 %v1259, %v1256
    %v1344 = vpack.c.b16 %v1263, %v1260
    %v1345 = vpack.c.b16 %v1264, %v1261
    %v1346 = vpack.c.b16 %v1265, %v1262
    %v1347 = vpack.c.b16 %v1269, %v1266
    %v1348 = vpack.c.b16 %v1270, %v1267
    %v1349 = vpack.c.b16 %v1271, %v1268
    %v1350 = vpack.c.b16 %v1275, %v1272
    %v1351 = vpack.c.b16 %v1276, %v1273
    %v1352 = vpack.c.b16 %v1277, %v1274
    %v1353 = vpack.c.b16 %v1281, %v1278
    %v1354 = vpack.c.b16 %v1282, %v1279
    %v1355 = vpack.c.b16 %v1283, %v1280
    %v1356 = vpack.c.b16 %v1287, %v1284
    %v1357 = vpack.c.b16 %v1288, %v1285
    %v1358 = vpack.c.b16 %v1289, %v1286
    %v1359 = vpack.c.b16 %v1293, %v1290
    %v1360 = vpack.c.b16 %v1294, %v1291
    %v1361 = vpack.c.b16 %v1295, %v1292
    %v1362 = vpack.c.b16 %v1299, %v1296
    %v1363 = vpack.c.b16 %v1300, %v1297
    %v1364 = vpack.c.b16 %v1301, %v1298
    %v1365 = vpack.c.b16 %v1305, %v1302
    %v1366 = vpack.c.b16 %v1306, %v1303
    %v1367 = vpack.c.b16 %v1307, %v1304
    %v1368 = vpack.c.b16 %v1311, %v1308
    %v1369 = vpack.c.b16 %v1312, %v1309
    %v1370 = vpack.c.b16 %v1313, %v1310
    %v1371 = vpack.c.b16 %v1317, %v1314
    %v1372 = vpack.c.b16 %v1318, %v1315
    %v1373 = vpack.c.b16 %v1319, %v1316
    %v1374 = vpack.c.b16 %v1323, %v1320
    %v1375 = vpack.c.b16 %v1324, %v1321
    %v1376 = vpack.c.b16 %v1325, %v1322
    %v1377 = vpack.c.b16 %v1329, %v1326
    %v1378 = vpack.c.b16 %v1330, %v1327
    %v1379 = vpack.c.b16 %v1331, %v1328
    %1428 = vmatprep.subr.bf16.mxu0 %v1333
    %1429 = vmatpush1.bf16.msra.mxu0 %v1332
    %1430 = vmatprep.subr.bf16.mxu0 %v1336
    %1431 = vmatpush1.bf16.msra.mxu0 %v1335
    %1432 = vmatprep.subr.bf16.mxu0 %v1339
    %1433 = vmatpush1.bf16.msra.mxu0 %v1338
    %1434 = vmatprep.subr.bf16.mxu0 %v1342
    %1435 = vmatpush1.bf16.msra.mxu0 %v1341
    %1436 = vmatprep.subr.bf16.mxu0 %v1345
    %1437 = vmatpush1.bf16.msra.mxu0 %v1344
    %1438 = vmatprep.subr.bf16.mxu0 %v1348
    %1439 = vmatpush1.bf16.msra.mxu0 %v1347
    %1440 = vmatprep.subr.bf16.mxu0 %v1351
    %1441 = vmatpush1.bf16.msra.mxu0 %v1350
    %1442 = vmatprep.subr.bf16.mxu0 %v1354
    %1443 = vmatpush1.bf16.msra.mxu0 %v1353
    %1444 = vmatprep.subr.bf16.mxu0 %v1357
    %1445 = vmatpush1.bf16.msra.mxu0 %v1356
    %1446 = vmatprep.subr.bf16.mxu0 %v1360
    %1447 = vmatpush1.bf16.msra.mxu0 %v1359
    %1448 = vmatprep.subr.bf16.mxu0 %v1363
    %1449 = vmatpush1.bf16.msra.mxu0 %v1362
    %1450 = vmatprep.subr.bf16.mxu0 %v1366
    %1451 = vmatpush1.bf16.msra.mxu0 %v1365
    %1452 = vmatprep.subr.bf16.mxu0 %v1369
    %1453 = vmatpush1.bf16.msra.mxu0 %v1368
    %1454 = vmatprep.subr.bf16.mxu0 %v1372
    %1455 = vmatpush1.bf16.msra.mxu0 %v1371
    %1456 = vmatprep.subr.bf16.mxu0 %v1375
    %1457 = vmatpush1.bf16.msra.mxu0 %v1374
    %1458 = vmatprep.subr.bf16.mxu0 %v1378
    %1459 = vmatpush1.bf16.msra.mxu0 %v1377
    %1460 = vmatprep.mubr.bf16.mxu0 %v1090
    %1461 = vmatmul.mubr.bf16.gmra.mrb[0].mxu0 %v1089
    %v1462 = vpop.f32.mrb[0].mxu0
    %v1463 = vadd.f32 %v1160, %v1462
    %v1464 = vpop.f32.mrb[0].mxu0
    %v1465 = vadd.f32 %v1164, %v1464
    %v1466 = vpop.f32.mrb[0].mxu0
    %v1467 = vadd.f32 %v1160, %v1466
    %v1468 = vpop.f32.mrb[0].mxu0
    %v1469 = vadd.f32 %v1164, %v1468
    %1470 = vdwg.mxu0
    %1471 = vmatprep.subr.bf16.mxu0 0
    %1472 = vmatpush1.bf16.msra.mxu0 %v1334
    %1473 = vmatprep.subr.bf16.mxu0 0
    %1474 = vmatpush1.bf16.msra.mxu0 %v1337
    %1475 = vmatprep.subr.bf16.mxu0 0
    %1476 = vmatpush1.bf16.msra.mxu0 %v1340
    %1477 = vmatprep.subr.bf16.mxu0 0
    %1478 = vmatpush1.bf16.msra.mxu0 %v1343
    %1479 = vmatprep.subr.bf16.mxu0 0
    %1480 = vmatpush1.bf16.msra.mxu0 %v1346
    %1481 = vmatprep.subr.bf16.mxu0 0
    %1482 = vmatpush1.bf16.msra.mxu0 %v1349
    %1483 = vmatprep.subr.bf16.mxu0 0
    %1484 = vmatpush1.bf16.msra.mxu0 %v1352
    %1485 = vmatprep.subr.bf16.mxu0 0
    %1486 = vmatpush1.bf16.msra.mxu0 %v1355
    %1487 = vmatprep.subr.bf16.mxu0 0
    %1488 = vmatpush1.bf16.msra.mxu0 %v1358
    %1489 = vmatprep.subr.bf16.mxu0 0
    %1490 = vmatpush1.bf16.msra.mxu0 %v1361
    %1491 = vmatprep.subr.bf16.mxu0 0
    %1492 = vmatpush1.bf16.msra.mxu0 %v1364
    %1493 = vmatprep.subr.bf16.mxu0 0
    %1494 = vmatpush1.bf16.msra.mxu0 %v1367
    %1495 = vmatprep.subr.bf16.mxu0 0
    %1496 = vmatpush1.bf16.msra.mxu0 %v1370
    %1497 = vmatprep.subr.bf16.mxu0 0
    %1498 = vmatpush1.bf16.msra.mxu0 %v1373
    %1499 = vmatprep.subr.bf16.mxu0 0
    %1500 = vmatpush1.bf16.msra.mxu0 %v1376
    %1501 = vmatprep.subr.bf16.mxu0 0
    %1502 = vmatpush1.bf16.msra.mxu0 %v1379
    %1503 = vmatprep.mubr.bf16.mxu0 %v1090
    %1504 = vmatmul.mubr.bf16.gmra.mrb[0].mxu0 %v1089
    %v1505 = vpop.f32.mrb[0].mxu0
    %v1506 = vadd.f32 %v1168, %v1505
    %v1507 = vpop.f32.mrb[0].mxu0
    %v1508 = vpop.f32.mrb[0].mxu0
    %v1509 = vadd.f32 %v1168, %v1508
    %v1510 = vpop.f32.mrb[0].mxu0
    %1511 = vdwg.mxu0
    %v1512 = vmul.f32 %v1463, 0.5
    %v1513 = vmul.f32 %v1465, 0.5
    %v1514 = vmul.f32 %v1506, 0.5
    %v1515 = vmul.f32 %v1467, 0.5
    %v1516 = vmul.f32 %v1469, 0.5
    %v1517 = vmul.f32 %v1509, 0.5
    %v1518 = vtanh.pop %v1512
    %v1519 = vtanh.pop %v1513
    %v1520 = vtanh.pop %v1514
    %v1521 = vtanh.pop %v1515
    %v1522 = vtanh.pop %v1516
    %v1523 = vtanh.pop %v1517
    %v1524 = vmul.f32 %v1518, 0.5
    %v1525 = vmul.f32 %v1519, 0.5
    %v1526 = vmul.f32 %v1520, 0.5
    %v1527 = vmul.f32 %v1521, 0.5
    %v1528 = vmul.f32 %v1522, 0.5
    %v1529 = vmul.f32 %v1523, 0.5
    %v1530 = vadd.f32 %v1524, 0.5
    %v1531 = vadd.f32 %v1525, 0.5
    %v1532 = vadd.f32 %v1526, 0.5
    %v1533 = vadd.f32 %v1527, 0.5
    %v1534 = vadd.f32 %v1528, 0.5
    %v1535 = vadd.f32 %v1529, 0.5
    %1536 = vst [vmem:[%s13] sm:$0xff] %v1530
    %1537 = vst [vmem:[%s13 + $0x8] sm:$0xff] %v1531
    %1538 = vst [vmem:[%s13 + $0x10] sm:$0xff] %v1532
    %1539 = vst [vmem:[%s13 + $0x18] sm:$0xff] %v1533
    %1540 = vst [vmem:[%s13 + $0x20] sm:$0xff] %v1534
    %1541 = vst [vmem:[%s13 + $0x28] sm:$0xff] %v1535
    // Predicated region
    $region74: #{linear_autoencoder.1} parent=1 // pred_check
      _
    $region75: #{linear_autoencoder.1} parent=1 // pred_check_branch
      %1543 = sbr.rel (0) target = $region77
    $region76: #{linear_autoencoder.1} parent=1 // pred_region
      _
    $region77: #{linear_autoencoder.1} parent=1 // pred_fallthru
      _
    // Predicated region
    $region78: #{linear_autoencoder.1} parent=1 // pred_check
      _
    $region79: #{linear_autoencoder.1} parent=1 // pred_check_branch
      %1545 = sbr.rel (0) target = $region81
    $region80: #{linear_autoencoder.1} parent=1 // pred_region
      _
    $region81: #{linear_autoencoder.1} parent=1 // pred_fallthru
      _
    %1546 = vsyncpa [#allocation3], 1
    %1547 = vsyncpa [#allocation5], 1
    %1548 = vsyncpa [#allocation8], 1

</llo_original>
